<compile_context>
chip_gen: v7x
topology: tpu7x:2x2x1
jax: 0.10.0
libtpu: 0.0.40
codegen_flags: <defaults>
</compile_context>

<pallas_src>
import functools
import math

import jax
import jax.numpy as jnp
from jax import lax
from jax.experimental import pallas as pl
from jax.experimental.pallas import tpu as pltpu

GROUPS = 32
EPS = 1e-5
_B0 = 16  # aligned base row of the activation slab inside the VMEM scratch


def _round_up(n, m):
    return (n + m - 1) // m * m


# ----------------------------------------------------------------------------
# In-kernel helpers
# ----------------------------------------------------------------------------
def _gn_silu(piece, scale, shift):
    """GroupNorm (folded into per-channel scale/shift) + SiLU on (rows, C) f32."""
    y = piece * scale + shift
    return y * jax.nn.sigmoid(y)


def _store_shifted(slab_ref, h, base, W):
    """Write h (rows, C) f32 into the 3C-wide bf16 slab as three column blocks:
    the dx=0 neighbour (down-shifted by one flat row), the center tap, and the
    dx=2 neighbour (up-shifted by one flat row).  The horizontally wrapped edge
    columns are zeroed during the bulk store, so every tap load later is a plain
    contiguous read and no output masking is needed."""
    rows, C = h.shape
    col = lax.broadcasted_iota(jnp.int32, (rows, 1), 0) % W
    not_last = (col != (W - 1)).astype(h.dtype)   # kills wrap of the dx=0 taps
    not_first = (col != 0).astype(h.dtype)        # kills wrap of the dx=2 taps
    dt = slab_ref.dtype
    slab_ref[base:base + rows, C:2 * C] = h.astype(dt)
    slab_ref[base + 1:base + 1 + rows, 0:C] = (h * not_last).astype(dt)
    slab_ref[base - 1:base - 1 + rows, 2 * C:3 * C] = (h * not_first).astype(dt)


def _conv_from_slab(slab_ref, wcat_ref, Mt, W):
    """3x3 conv of the tile = 3 bf16 MXU matmuls with K = 3*C (dx merged)."""
    acc = None
    for dy in range(3):
        r = _B0 + dy * W
        tap = jnp.dot(slab_ref[r:r + Mt, :], wcat_ref[dy],
                      preferred_element_type=jnp.float32)
        acc = tap if acc is None else acc + tap
    return acc


def _gn_silu_conv_kernel(top_ref, mid_ref, bot_ref, sc_ref, sh_ref, wcat_ref,
                         bias_ref, *rest, TH, W, n_tiles, residual, has_skip):
    """One row tile: GroupNorm (precomputed stats) -> SiLU -> 3x3 conv
    [-> + skip for stage 2]."""
    if residual:
        if has_skip:
            x_ref, ws_ref, bs_ref, o_ref, slab_ref = rest
        else:
            x_ref, o_ref, slab_ref = rest
    else:
        o_ref, slab_ref = rest

    C = mid_ref.shape[3]
    Cout = o_ref.shape[3]
    Mt = TH * W
    Mh = (TH + 2) * W

    scale = sc_ref[0]      # (1, C) per-sample folded GN scale
    shift = sh_ref[0]      # (1, C) per-sample folded GN shift

    # The two slab rows that the bulk stores below only partially cover; zero
    # them first so no stale data from a previous grid step is ever read (keeps
    # the kernel correct when the parallel axes are split across TensorCores).
    zero = jnp.zeros((1, slab_ref.shape[1]), slab_ref.dtype)
    slab_ref[_B0:_B0 + 1, :] = zero
    slab_ref[_B0 + Mh - 1:_B0 + Mh, :] = zero

    t_id = pl.program_id(1)
    top_ok = (t_id > 0).astype(jnp.float32)            # zero halo above row 0
    bot_ok = (t_id < n_tiles - 1).astype(jnp.float32)  # zero halo below row H-1

    top = top_ref[0, 0].astype(jnp.float32)                 # (W, C)
    mid = mid_ref[0].reshape(Mt, C).astype(jnp.float32)     # (TH*W, C)
    bot = bot_ref[0, 0].astype(jnp.float32)                 # (W, C)

    _store_shifted(slab_ref, _gn_silu(top, scale, shift) * top_ok, _B0, W)
    _store_shifted(slab_ref, _gn_silu(mid, scale, shift), _B0 + W, W)
    _store_shifted(slab_ref, _gn_silu(bot, scale, shift) * bot_ok,
                   _B0 + (TH + 1) * W, W)

    acc = _conv_from_slab(slab_ref, wcat_ref, Mt, W) + bias_ref[...]

    if residual:
        xf = x_ref[0].reshape(Mt, x_ref.shape[3])
        if has_skip:
            skip = jnp.dot(xf.astype(jnp.bfloat16), ws_ref[...],
                           preferred_element_type=jnp.float32) + bs_ref[...]
        else:
            skip = xf.astype(jnp.float32)   # identity skip: no eye-matmul
        acc = acc + skip

    o_ref[0] = acc.reshape(TH, W, Cout).astype(o_ref.dtype)


# ----------------------------------------------------------------------------
# Wrapper-side helpers
# ----------------------------------------------------------------------------
def _group_affine(h, gamma, beta):
    """GroupNorm(32) stats folded with the affine into per-(sample, channel)
    scale/shift.  Centered two-pass in f32 (no E[x^2]-E[x]^2 cancellation)."""
    B, H, W, C = h.shape
    cs = C // GROUPS
    hf = h.astype(jnp.float32).reshape(B, H * W, GROUPS, cs)
    mean = hf.mean(axis=(1, 3), keepdims=True)                       # (B,1,G,1)
    var = jnp.square(hf - mean).mean(axis=(1, 3), keepdims=True)
    inv = lax.rsqrt(var + EPS)
    mean_c = jnp.broadcast_to(mean, (B, 1, GROUPS, cs)).reshape(B, 1, C)
    inv_c = jnp.broadcast_to(inv, (B, 1, GROUPS, cs)).reshape(B, 1, C)
    scale = inv_c * gamma.reshape(1, 1, C).astype(jnp.float32)
    shift = beta.reshape(1, 1, C).astype(jnp.float32) - mean_c * scale
    return scale, shift


def _pack_conv3x3(w_oihw):
    """OIHW -> (ky, kx*Cin, Cout) bf16: the 3 dx taps of each kernel row are
    stacked along K so one MXU matmul per dy does the whole row of taps."""
    cout, cin = w_oihw.shape[0], w_oihw.shape[1]
    w = jnp.transpose(w_oihw, (2, 3, 1, 0))          # (ky, kx, Cin, Cout)
    return w.reshape(3, 3 * cin, cout).astype(jnp.bfloat16)


def _vmem_capacity_bytes():
    try:
        cap = int(pltpu.get_tpu_info().vmem_capacity_bytes)
        if cap > 0:
            return cap
    except Exception:
        pass
    return 64 * 1024 * 1024  # assume the smallest (v7x per-TensorCore) if unknown


def _choose_tile_rows(H, W, cin, cout, vmem_cap, requested):
    """Largest divisor of H whose per-step working set fits the VMEM budget."""
    if requested is not None:
        assert H % requested == 0, "tile_rows must divide H"
        return requested
    cmax = max(cin, cout)
    budget = int(vmem_cap * 0.40)  # headroom for double-buffering + compiler scratch

    def footprint(th):
        mh = (th + 2) * W
        mt = th * W
        slab = (_B0 + mh + 16) * 3 * cmax * 2                # bf16 slab
        wts = 2 * 9 * cmax * cout * 2 * 2                    # conv weights, 2 bufs
        s1 = 2 * mt * (cin * 4 + cout * 2)                   # stage-1 in/out, 2 bufs
        s2 = 2 * mt * (cout * 2 + cin * 4 + cout * 4)        # stage-2 in/out, 2 bufs
        live = mh * cmax * 4 + 2 * mt * cout * 4             # f32 activations + acc
        return slab + wts + max(s1, s2) + live

    divisors = sorted((d for d in range(1, H + 1) if H % d == 0), reverse=True)
    for th in divisors:
        if th <= 64 and footprint(th) <= budget:
            return th
    return divisors[-1]


# ----------------------------------------------------------------------------
# Forward pass
# ----------------------------------------------------------------------------
def vae_residual_block_nhwc(x_nhwc, params, *, tile_rows=None):
    """VAE_ResidualBlock forward on an NHWC f32 input; returns NHWC f32."""
    B, H, W, Cin = x_nhwc.shape
    Cout = params["conv1_w"].shape[0]
    assert Cin % GROUPS == 0 and Cout % GROUPS == 0
    has_skip = Cin != Cout

    vmem_cap = _vmem_capacity_bytes()
    TH = _choose_tile_rows(H, W, Cin, Cout, vmem_cap, tile_rows)
    nT = H // TH
    Mh = (TH + 2) * W
    slab_rows = _round_up(_B0 + Mh + 1, 16)
    vmem_limit = max(32 << 20, min(vmem_cap - (8 << 20), 100 << 20))

    cparams = pltpu.CompilerParams(
        dimension_semantics=("parallel", "parallel"),   # (sample, row-tile)
        vmem_limit_bytes=vmem_limit,
    )

    x = x_nhwc.astype(jnp.float32)

    # GroupNorm statistics precomputed outside the kernels (centered two-pass).
    sc1, sh1 = _group_affine(x, params["norm1_w"], params["norm1_b"])
    w1 = _pack_conv3x3(params["conv1_w"])
    b1 = params["conv1_b"].reshape(1, Cout).astype(jnp.float32)
    w2 = _pack_conv3x3(params["conv2_w"])
    b2 = params["conv2_b"].reshape(1, Cout).astype(jnp.float32)

    grid = (B, nT)

    def row_spec(c):
        return pl.BlockSpec((1, TH, W, c), lambda b, t: (b, t, 0, 0))

    def halo_above(c):
        return pl.BlockSpec((1, 1, W, c),
                            lambda b, t: (b, jnp.maximum(t * TH - 1, 0), 0, 0))

    def halo_below(c):
        return pl.BlockSpec((1, 1, W, c),
                            lambda b, t: (b, jnp.minimum((t + 1) * TH, H - 1), 0, 0))

    def per_sample_vec(c):
        return pl.BlockSpec((1, 1, c), lambda b, t: (b, 0, 0))

    def full(a):
        return pl.BlockSpec(a.shape, lambda b, t: (0,) * a.ndim)

    # --- Stage 1: GN1 -> SiLU -> conv1 (row-tiled, bf16 intermediate) --------
    stage1 = functools.partial(_gn_silu_conv_kernel, TH=TH, W=W, n_tiles=nT,
                               residual=False, has_skip=False)
    h1 = pl.pallas_call(
        stage1,
        out_shape=jax.ShapeDtypeStruct((B, H, W, Cout), jnp.bfloat16),
        grid=grid,
        in_specs=[halo_above(Cin), row_spec(Cin), halo_below(Cin),
                  per_sample_vec(Cin), per_sample_vec(Cin), full(w1), full(b1)],
        out_specs=row_spec(Cout),
        scratch_shapes=[pltpu.VMEM((slab_rows, 3 * Cin), jnp.bfloat16)],
        compiler_params=cparams,
    )(x, x, x, sc1, sh1, w1, b1)

    # --- Stage 2: GN2 -> SiLU -> conv2 -> + skip (row-tiled) -----------------
    sc2, sh2 = _group_affine(h1, params["norm2_w"], params["norm2_b"])
    operands = [h1, h1, h1, sc2, sh2, w2, b2, x]
    in_specs = [halo_above(Cout), row_spec(Cout), halo_below(Cout),
                per_sample_vec(Cout), per_sample_vec(Cout), full(w2), full(b2),
                row_spec(Cin)]
    if has_skip:
        ws = jnp.transpose(params["skip_w"].reshape(Cout, Cin), (1, 0)).astype(jnp.bfloat16)
        bs = params["skip_b"].reshape(1, Cout).astype(jnp.float32)
        operands += [ws, bs]
        in_specs += [full(ws), full(bs)]

    stage2 = functools.partial(_gn_silu_conv_kernel, TH=TH, W=W, n_tiles=nT,
                               residual=True, has_skip=has_skip)
    out = pl.pallas_call(
        stage2,
        out_shape=jax.ShapeDtypeStruct((B, H, W, Cout), jnp.float32),
        grid=grid,
        in_specs=in_specs,
        out_specs=row_spec(Cout),
        scratch_shapes=[pltpu.VMEM((slab_rows, 3 * Cout), jnp.bfloat16)],
        compiler_params=cparams,
    )(*operands)
    return out


def vae_residual_block(x_nchw, params, *, tile_rows=None):
    """PyTorch-layout (NCHW f32) entry point."""
    x_nhwc = jnp.transpose(x_nchw, (0, 2, 3, 1))
    out = vae_residual_block_nhwc(x_nhwc, params, tile_rows=tile_rows)
    return jnp.transpose(out, (0, 3, 1, 2))


# ----------------------------------------------------------------------------
# Pure-JAX reference
# ----------------------------------------------------------------------------
def ref_forward(x_nchw, p, conv_dtype=jnp.float32, round_hidden=False):
    """conv_dtype=bf16 mimics the MXU input precision; round_hidden mimics the
    bf16 intermediate the kernel stores between the two stages."""
    rd = lambda a: a.astype(conv_dtype).astype(jnp.float32)
    x = jnp.transpose(x_nchw, (0, 2, 3, 1)).astype(jnp.float32)  # NHWC

    def gn(h, g, b):
        B_, H_, W_, C = h.shape
        cs = C // GROUPS
        hg = h.reshape(B_, H_ * W_, GROUPS, cs)
        mean = hg.mean(axis=(1, 3), keepdims=True)
        var = ((hg - mean) ** 2).mean(axis=(1, 3), keepdims=True)
        hn = (hg - mean) * lax.rsqrt(var + EPS)
        return hn.reshape(B_, H_, W_, C) * g + b

    def conv(h, w_oihw, bias):
        w = jnp.transpose(w_oihw, (2, 3, 1, 0)).astype(jnp.float32)  # HWIO
        y = lax.conv_general_dilated(rd(h), rd(w), (1, 1), "SAME",
                                     dimension_numbers=("NHWC", "HWIO", "NHWC"),
                                     precision=lax.Precision.HIGHEST)
        return y + bias.astype(jnp.float32)

    h = gn(x, p["norm1_w"], p["norm1_b"])
    h = h * jax.nn.sigmoid(h)
    h = conv(h, p["conv1_w"], p["conv1_b"])
    if round_hidden:
        h = h.astype(jnp.bfloat16).astype(jnp.float32)
    h = gn(h, p["norm2_w"], p["norm2_b"])
    h = h * jax.nn.sigmoid(h)
    h = conv(h, p["conv2_w"], p["conv2_b"])
    s = conv(x, p["skip_w"], p["skip_b"]) if "skip_w" in p else x
    return jnp.transpose(h + s, (0, 3, 1, 2))


if __name__ == "__main__":
    def make_params(key, cin, cout):
        keys = jax.random.split(key, 10)

        def uni(k, shape, bound):
            return jax.random.uniform(k, shape, jnp.float32, -bound, bound)

        b1 = 1.0 / math.sqrt(cin * 9)
        b2 = 1.0 / math.sqrt(cout * 9)
        p = {
            "norm1_w": 1.0 + 0.1 * jax.random.normal(keys[0], (cin,), jnp.float32),
            "norm1_b": 0.1 * jax.random.normal(keys[1], (cin,), jnp.float32),
            "conv1_w": uni(keys[2], (cout, cin, 3, 3), b1),
            "conv1_b": uni(keys[3], (cout,), b1),
            "norm2_w": 1.0 + 0.1 * jax.random.normal(keys[4], (cout,), jnp.float32),
            "norm2_b": 0.1 * jax.random.normal(keys[5], (cout,), jnp.float32),
            "conv2_w": uni(keys[6], (cout, cout, 3, 3), b2),
            "conv2_b": uni(keys[7], (cout,), b2),
        }
        if cin != cout:
            bsk = 1.0 / math.sqrt(cin)
            p["skip_w"] = uni(keys[8], (cout, cin, 1, 1), bsk)
            p["skip_b"] = uni(keys[9], (cout,), bsk)
        return p

    key = jax.random.PRNGKey(0)
    k1, k2, k3, k4 = jax.random.split(key, 4)

    # Case 1: Cin != Cout (1x1-conv skip), 2 row tiles -> exercises the halo path.
    B, Cin, Cout, H, W = 2, 32, 64, 16, 16
    params = make_params(k1, Cin, Cout)
    x = jax.random.normal(k2, (B, Cin, H, W), jnp.float32)
    out = jax.block_until_ready(vae_residual_block(x, params, tile_rows=8))
    assert out.shape == (B, Cout, H, W), out.shape
    err_tight = float(jnp.max(jnp.abs(out - ref_forward(x, params, jnp.bfloat16,
                                                        round_hidden=True))))
    err_loose = float(jnp.max(jnp.abs(out - ref_forward(x, params, jnp.float32))))
    assert err_tight < 1e-2, f"kernel vs bf16-precision reference: {err_tight}"
    assert err_loose < 5e-2, f"kernel vs f32 reference: {err_loose}"

    # Case 2: Cin == Cout (identity skip), default (auto) tiling.
    B2, C2, H2, W2 = 1, 64, 8, 8
    params2 = make_params(k3, C2, C2)
    x2 = jax.random.normal(k4, (B2, C2, H2, W2), jnp.float32)
    out2 = jax.block_until_ready(vae_residual_block(x2, params2))
    assert out2.shape == (B2, C2, H2, W2), out2.shape
    err2 = float(jnp.max(jnp.abs(out2 - ref_forward(x2, params2, jnp.bfloat16,
                                                    round_hidden=True))))
    assert err2 < 1e-2, f"identity-skip case error: {err2}"

    print("KERNEL_OK")
</pallas_src>

<mosaic_0001>
module attributes {stable_mosaic.version = 11 : i64} {
  func.func @_gn_silu_conv_kernel(%arg0: i32, %arg1: i32, %arg2: memref<1x1x16x32xf32, #tpu.memory_space<vmem>>, %arg3: memref<1x8x16x32xf32, #tpu.memory_space<vmem>>, %arg4: memref<1x1x16x32xf32, #tpu.memory_space<vmem>>, %arg5: memref<1x1x32xf32, #tpu.memory_space<vmem>>, %arg6: memref<1x1x32xf32, #tpu.memory_space<vmem>>, %arg7: memref<3x96x64xbf16, #tpu.memory_space<vmem>>, %arg8: memref<1x64xf32, #tpu.memory_space<vmem>>, %arg9: memref<1x8x16x64xbf16, #tpu.memory_space<vmem>>, %arg10: memref<192x96xbf16, #tpu.memory_space<vmem>>) attributes {dimension_semantics = [#tpu.dimension_semantics<parallel>, #tpu.dimension_semantics<parallel>], iteration_bounds = array<i64: 2, 2>, scalar_prefetch = 0 : i64, scratch_operands = 1 : i64, tpu.core_type = #tpu.core_type<tc>, window_params = [{transform_indices = @transform_0, window_bounds = array<i64: 1, 1, 16, 32>}, {transform_indices = @transform_1, window_bounds = array<i64: 1, 8, 16, 32>}, {transform_indices = @transform_2, window_bounds = array<i64: 1, 1, 16, 32>}, {transform_indices = @transform_3, window_bounds = array<i64: 1, 1, 32>}, {transform_indices = @transform_4, window_bounds = array<i64: 1, 1, 32>}, {pipeline_mode = #tpu.pipeline_mode<synchronous>, transform_indices = @transform_5, window_bounds = array<i64: 3, 96, 64>}, {pipeline_mode = #tpu.pipeline_mode<synchronous>, transform_indices = @transform_6, window_bounds = array<i64: 1, 64>}, {transform_indices = @transform_7, window_bounds = array<i64: 1, 8, 16, 64>}]} {
    %c0 = arith.constant 0 : index
    %c0_0 = arith.constant 0 : index
    %c0_1 = arith.constant 0 : index
    %0 = vector.load %arg5[%c0, %c0_0, %c0_1] : memref<1x1x32xf32, #tpu.memory_space<vmem>>, vector<1x1x32xf32>
    %1 = vector.shape_cast %0 : vector<1x1x32xf32> to vector<1x32xf32>
    %c0_2 = arith.constant 0 : index
    %c0_3 = arith.constant 0 : index
    %c0_4 = arith.constant 0 : index
    %2 = vector.load %arg6[%c0_2, %c0_3, %c0_4] : memref<1x1x32xf32, #tpu.memory_space<vmem>>, vector<1x1x32xf32>
    %3 = vector.shape_cast %2 : vector<1x1x32xf32> to vector<1x32xf32>
    %cst = arith.constant 0.000000e+00 : bf16
    %4 = vector.broadcast %cst : bf16 to vector<1x96xbf16>
    %c16 = arith.constant 16 : index
    %c0_5 = arith.constant 0 : index
    %5 = vector.load %arg10[%c16, %c0_5] : memref<192x96xbf16, #tpu.memory_space<vmem>>, vector<1x96xbf16>
    tpu.vector_store %arg10[%c16, %c0_5], %4 {strides = array<i32>} : memref<192x96xbf16, #tpu.memory_space<vmem>>, vector<1x96xbf16>,
    %c175 = arith.constant 175 : index
    %c0_6 = arith.constant 0 : index
    %6 = vector.load %arg10[%c175, %c0_6] : memref<192x96xbf16, #tpu.memory_space<vmem>>, vector<1x96xbf16>
    tpu.vector_store %arg10[%c175, %c0_6], %4 {strides = array<i32>} : memref<192x96xbf16, #tpu.memory_space<vmem>>, vector<1x96xbf16>,
    %c0_i32 = arith.constant 0 : i32
    %7 = arith.cmpi sgt, %arg1, %c0_i32 : i32
    %8 = arith.extui %7 : i1 to i32
    %9 = arith.sitofp %8 : i32 to f32
    %c1_i32 = arith.constant 1 : i32
    %10 = arith.cmpi slt, %arg1, %c1_i32 : i32
    %11 = arith.extui %10 : i1 to i32
    %12 = arith.sitofp %11 : i32 to f32
    %c0_7 = arith.constant 0 : index
    %c0_8 = arith.constant 0 : index
    %c0_9 = arith.constant 0 : index
    %c0_10 = arith.constant 0 : index
    %13 = vector.load %arg2[%c0_7, %c0_8, %c0_9, %c0_10] : memref<1x1x16x32xf32, #tpu.memory_space<vmem>>, vector<1x1x16x32xf32>
    %14 = vector.shape_cast %13 : vector<1x1x16x32xf32> to vector<16x32xf32>
    %c0_11 = arith.constant 0 : index
    %c0_12 = arith.constant 0 : index
    %c0_13 = arith.constant 0 : index
    %c0_14 = arith.constant 0 : index
    %15 = vector.load %arg3[%c0_11, %c0_12, %c0_13, %c0_14] : memref<1x8x16x32xf32, #tpu.memory_space<vmem>>, vector<1x8x16x32xf32>
    %16 = vector.shape_cast %15 : vector<1x8x16x32xf32> to vector<8x16x32xf32>
    %17 = vector.shape_cast %16 : vector<8x16x32xf32> to vector<128x32xf32>
    %c0_15 = arith.constant 0 : index
    %c0_16 = arith.constant 0 : index
    %c0_17 = arith.constant 0 : index
    %c0_18 = arith.constant 0 : index
    %18 = vector.load %arg4[%c0_15, %c0_16, %c0_17, %c0_18] : memref<1x1x16x32xf32, #tpu.memory_space<vmem>>, vector<1x1x16x32xf32>
    %19 = vector.shape_cast %18 : vector<1x1x16x32xf32> to vector<16x32xf32>
    %20 = vector.broadcast %1 : vector<1x32xf32> to vector<16x32xf32>
    %21 = arith.mulf %14, %20 : vector<16x32xf32>
    %22 = vector.broadcast %3 : vector<1x32xf32> to vector<16x32xf32>
    %23 = arith.addf %21, %22 : vector<16x32xf32>
    %24 = arith.negf %23 : vector<16x32xf32>
    %25 = math.exp %24 : vector<16x32xf32>
    %cst_19 = arith.constant 1.000000e+00 : f32
    %26 = vector.broadcast %cst_19 : f32 to vector<16x32xf32>
    %27 = arith.addf %26, %25 : vector<16x32xf32>
    %28 = arith.divf %26, %27 : vector<16x32xf32>
    %29 = arith.mulf %23, %28 : vector<16x32xf32>
    %30 = vector.broadcast %9 : f32 to vector<16x32xf32>
    %31 = arith.mulf %29, %30 : vector<16x32xf32>
    %32 = tpu.iota {dimensions = array<i32: 0>} : vector<16x1xi32>
    %c16_i32 = arith.constant 16 : i32
    %c0_i32_20 = arith.constant 0 : i32
    %33 = arith.cmpi eq, %c16_i32, %c0_i32_20 : i32
    %c1_i32_21 = arith.constant 1 : i32
    %34 = arith.select %33, %c1_i32_21, %c16_i32 : i32
    %35 = vector.broadcast %34 : i32 to vector<16x1xi32>
    %36 = arith.remsi %32, %35 : vector<16x1xi32>
    %c0_i32_22 = arith.constant 0 : i32
    %37 = vector.broadcast %c0_i32_22 : i32 to vector<16x1xi32>
    %38 = arith.cmpi ne, %36, %37 : vector<16x1xi32>
    %c0_i32_23 = arith.constant 0 : i32
    %39 = vector.broadcast %c0_i32_23 : i32 to vector<16x1xi32>
    %40 = arith.cmpi slt, %36, %39 : vector<16x1xi32>
    %c0_i32_24 = arith.constant 0 : i32
    %41 = arith.cmpi slt, %34, %c0_i32_24 : i32
    %42 = vector.broadcast %41 : i1 to vector<16x1xi1>
    %43 = vector.broadcast %42 : vector<16x1xi1> to vector<16x1xi1>
    %44 = arith.xori %40, %43 : vector<16x1xi1>
    %45 = arith.andi %44, %38 : vector<16x1xi1>
    %46 = vector.broadcast %34 : i32 to vector<16x1xi32>
    %47 = arith.addi %36, %46 : vector<16x1xi32>
    %48 = arith.select %45, %47, %36 : vector<16x1xi1>, vector<16x1xi32>
    %c15_i32 = arith.constant 15 : i32
    %49 = vector.broadcast %c15_i32 : i32 to vector<16x1xi32>
    %50 = arith.cmpi ne, %48, %49 : vector<16x1xi32>
    %51 = arith.extui %50 : vector<16x1xi1> to vector<16x1xi32>
    %52 = arith.sitofp %51 : vector<16x1xi32> to vector<16x1xf32>
    %c0_i32_25 = arith.constant 0 : i32
    %53 = vector.broadcast %c0_i32_25 : i32 to vector<16x1xi32>
    %54 = arith.cmpi ne, %48, %53 : vector<16x1xi32>
    %55 = arith.extui %54 : vector<16x1xi1> to vector<16x1xi32>
    %56 = arith.sitofp %55 : vector<16x1xi32> to vector<16x1xf32>
    %57 = arith.truncf %31 : vector<16x32xf32> to vector<16x32xbf16>
    %c16_26 = arith.constant 16 : index
    %c32 = arith.constant 32 : index
    %58 = vector.load %arg10[%c16_26, %c32] : memref<192x96xbf16, #tpu.memory_space<vmem>>, vector<16x32xbf16>
    tpu.vector_store %arg10[%c16_26, %c32], %57 {strides = array<i32>} : memref<192x96xbf16, #tpu.memory_space<vmem>>, vector<16x32xbf16>,
    %59 = vector.broadcast %52 : vector<16x1xf32> to vector<16x32xf32>
    %60 = arith.mulf %31, %59 : vector<16x32xf32>
    %61 = arith.truncf %60 : vector<16x32xf32> to vector<16x32xbf16>
    %c17 = arith.constant 17 : index
    %c0_27 = arith.constant 0 : index
    %62 = vector.load %arg10[%c17, %c0_27] : memref<192x96xbf16, #tpu.memory_space<vmem>>, vector<16x32xbf16>
    tpu.vector_store %arg10[%c17, %c0_27], %61 {strides = array<i32>} : memref<192x96xbf16, #tpu.memory_space<vmem>>, vector<16x32xbf16>,
    %63 = vector.broadcast %56 : vector<16x1xf32> to vector<16x32xf32>
    %64 = arith.mulf %31, %63 : vector<16x32xf32>
    %65 = arith.truncf %64 : vector<16x32xf32> to vector<16x32xbf16>
    %c15 = arith.constant 15 : index
    %c64 = arith.constant 64 : index
    %66 = vector.load %arg10[%c15, %c64] : memref<192x96xbf16, #tpu.memory_space<vmem>>, vector<16x32xbf16>
    tpu.vector_store %arg10[%c15, %c64], %65 {strides = array<i32>} : memref<192x96xbf16, #tpu.memory_space<vmem>>, vector<16x32xbf16>,
    %67 = vector.broadcast %1 : vector<1x32xf32> to vector<128x32xf32>
    %68 = arith.mulf %17, %67 : vector<128x32xf32>
    %69 = vector.broadcast %3 : vector<1x32xf32> to vector<128x32xf32>
    %70 = arith.addf %68, %69 : vector<128x32xf32>
    %71 = arith.negf %70 : vector<128x32xf32>
    %72 = math.exp %71 : vector<128x32xf32>
    %cst_28 = arith.constant 1.000000e+00 : f32
    %73 = vector.broadcast %cst_28 : f32 to vector<128x32xf32>
    %74 = arith.addf %73, %72 : vector<128x32xf32>
    %75 = arith.divf %73, %74 : vector<128x32xf32>
    %76 = arith.mulf %70, %75 : vector<128x32xf32>
    %77 = tpu.iota {dimensions = array<i32: 0>} : vector<128x1xi32>
    %c16_i32_29 = arith.constant 16 : i32
    %c0_i32_30 = arith.constant 0 : i32
    %78 = arith.cmpi eq, %c16_i32_29, %c0_i32_30 : i32
    %c1_i32_31 = arith.constant 1 : i32
    %79 = arith.select %78, %c1_i32_31, %c16_i32_29 : i32
    %80 = vector.broadcast %79 : i32 to vector<128x1xi32>
    %81 = arith.remsi %77, %80 : vector<128x1xi32>
    %c0_i32_32 = arith.constant 0 : i32
    %82 = vector.broadcast %c0_i32_32 : i32 to vector<128x1xi32>
    %83 = arith.cmpi ne, %81, %82 : vector<128x1xi32>
    %c0_i32_33 = arith.constant 0 : i32
    %84 = vector.broadcast %c0_i32_33 : i32 to vector<128x1xi32>
    %85 = arith.cmpi slt, %81, %84 : vector<128x1xi32>
    %c0_i32_34 = arith.constant 0 : i32
    %86 = arith.cmpi slt, %79, %c0_i32_34 : i32
    %87 = vector.broadcast %86 : i1 to vector<128x1xi1>
    %88 = vector.broadcast %87 : vector<128x1xi1> to vector<128x1xi1>
    %89 = arith.xori %85, %88 : vector<128x1xi1>
    %90 = arith.andi %89, %83 : vector<128x1xi1>
    %91 = vector.broadcast %79 : i32 to vector<128x1xi32>
    %92 = arith.addi %81, %91 : vector<128x1xi32>
    %93 = arith.select %90, %92, %81 : vector<128x1xi1>, vector<128x1xi32>
    %c15_i32_35 = arith.constant 15 : i32
    %94 = vector.broadcast %c15_i32_35 : i32 to vector<128x1xi32>
    %95 = arith.cmpi ne, %93, %94 : vector<128x1xi32>
    %96 = arith.extui %95 : vector<128x1xi1> to vector<128x1xi32>
    %97 = arith.sitofp %96 : vector<128x1xi32> to vector<128x1xf32>
    %c0_i32_36 = arith.constant 0 : i32
    %98 = vector.broadcast %c0_i32_36 : i32 to vector<128x1xi32>
    %99 = arith.cmpi ne, %93, %98 : vector<128x1xi32>
    %100 = arith.extui %99 : vector<128x1xi1> to vector<128x1xi32>
    %101 = arith.sitofp %100 : vector<128x1xi32> to vector<128x1xf32>
    %102 = arith.truncf %76 : vector<128x32xf32> to vector<128x32xbf16>
    %c32_37 = arith.constant 32 : index
    %c32_38 = arith.constant 32 : index
    %103 = vector.load %arg10[%c32_37, %c32_38] : memref<192x96xbf16, #tpu.memory_space<vmem>>, vector<128x32xbf16>
    tpu.vector_store %arg10[%c32_37, %c32_38], %102 {strides = array<i32>} : memref<192x96xbf16, #tpu.memory_space<vmem>>, vector<128x32xbf16>,
    %104 = vector.broadcast %97 : vector<128x1xf32> to vector<128x32xf32>
    %105 = arith.mulf %76, %104 : vector<128x32xf32>
    %106 = arith.truncf %105 : vector<128x32xf32> to vector<128x32xbf16>
    %c33 = arith.constant 33 : index
    %c0_39 = arith.constant 0 : index
    %107 = vector.load %arg10[%c33, %c0_39] : memref<192x96xbf16, #tpu.memory_space<vmem>>, vector<128x32xbf16>
    tpu.vector_store %arg10[%c33, %c0_39], %106 {strides = array<i32>} : memref<192x96xbf16, #tpu.memory_space<vmem>>, vector<128x32xbf16>,
    %108 = vector.broadcast %101 : vector<128x1xf32> to vector<128x32xf32>
    %109 = arith.mulf %76, %108 : vector<128x32xf32>
    %110 = arith.truncf %109 : vector<128x32xf32> to vector<128x32xbf16>
    %c31 = arith.constant 31 : index
    %c64_40 = arith.constant 64 : index
    %111 = vector.load %arg10[%c31, %c64_40] : memref<192x96xbf16, #tpu.memory_space<vmem>>, vector<128x32xbf16>
    tpu.vector_store %arg10[%c31, %c64_40], %110 {strides = array<i32>} : memref<192x96xbf16, #tpu.memory_space<vmem>>, vector<128x32xbf16>,
    %112 = vector.broadcast %1 : vector<1x32xf32> to vector<16x32xf32>
    %113 = arith.mulf %19, %112 : vector<16x32xf32>
    %114 = vector.broadcast %3 : vector<1x32xf32> to vector<16x32xf32>
    %115 = arith.addf %113, %114 : vector<16x32xf32>
    %116 = arith.negf %115 : vector<16x32xf32>
    %117 = math.exp %116 : vector<16x32xf32>
    %cst_41 = arith.constant 1.000000e+00 : f32
    %118 = vector.broadcast %cst_41 : f32 to vector<16x32xf32>
    %119 = arith.addf %118, %117 : vector<16x32xf32>
    %120 = arith.divf %118, %119 : vector<16x32xf32>
    %121 = arith.mulf %115, %120 : vector<16x32xf32>
    %122 = vector.broadcast %12 : f32 to vector<16x32xf32>
    %123 = arith.mulf %121, %122 : vector<16x32xf32>
    %124 = tpu.iota {dimensions = array<i32: 0>} : vector<16x1xi32>
    %c16_i32_42 = arith.constant 16 : i32
    %c0_i32_43 = arith.constant 0 : i32
    %125 = arith.cmpi eq, %c16_i32_42, %c0_i32_43 : i32
    %c1_i32_44 = arith.constant 1 : i32
    %126 = arith.select %125, %c1_i32_44, %c16_i32_42 : i32
    %127 = vector.broadcast %126 : i32 to vector<16x1xi32>
    %128 = arith.remsi %124, %127 : vector<16x1xi32>
    %c0_i32_45 = arith.constant 0 : i32
    %129 = vector.broadcast %c0_i32_45 : i32 to vector<16x1xi32>
    %130 = arith.cmpi ne, %128, %129 : vector<16x1xi32>
    %c0_i32_46 = arith.constant 0 : i32
    %131 = vector.broadcast %c0_i32_46 : i32 to vector<16x1xi32>
    %132 = arith.cmpi slt, %128, %131 : vector<16x1xi32>
    %c0_i32_47 = arith.constant 0 : i32
    %133 = arith.cmpi slt, %126, %c0_i32_47 : i32
    %134 = vector.broadcast %133 : i1 to vector<16x1xi1>
    %135 = vector.broadcast %134 : vector<16x1xi1> to vector<16x1xi1>
    %136 = arith.xori %132, %135 : vector<16x1xi1>
    %137 = arith.andi %136, %130 : vector<16x1xi1>
    %138 = vector.broadcast %126 : i32 to vector<16x1xi32>
    %139 = arith.addi %128, %138 : vector<16x1xi32>
    %140 = arith.select %137, %139, %128 : vector<16x1xi1>, vector<16x1xi32>
    %c15_i32_48 = arith.constant 15 : i32
    %141 = vector.broadcast %c15_i32_48 : i32 to vector<16x1xi32>
    %142 = arith.cmpi ne, %140, %141 : vector<16x1xi32>
    %143 = arith.extui %142 : vector<16x1xi1> to vector<16x1xi32>
    %144 = arith.sitofp %143 : vector<16x1xi32> to vector<16x1xf32>
    %c0_i32_49 = arith.constant 0 : i32
    %145 = vector.broadcast %c0_i32_49 : i32 to vector<16x1xi32>
    %146 = arith.cmpi ne, %140, %145 : vector<16x1xi32>
    %147 = arith.extui %146 : vector<16x1xi1> to vector<16x1xi32>
    %148 = arith.sitofp %147 : vector<16x1xi32> to vector<16x1xf32>
    %149 = arith.truncf %123 : vector<16x32xf32> to vector<16x32xbf16>
    %c160 = arith.constant 160 : index
    %c32_50 = arith.constant 32 : index
    %150 = vector.load %arg10[%c160, %c32_50] : memref<192x96xbf16, #tpu.memory_space<vmem>>, vector<16x32xbf16>
    tpu.vector_store %arg10[%c160, %c32_50], %149 {strides = array<i32>} : memref<192x96xbf16, #tpu.memory_space<vmem>>, vector<16x32xbf16>,
    %151 = vector.broadcast %144 : vector<16x1xf32> to vector<16x32xf32>
    %152 = arith.mulf %123, %151 : vector<16x32xf32>
    %153 = arith.truncf %152 : vector<16x32xf32> to vector<16x32xbf16>
    %c161 = arith.constant 161 : index
    %c0_51 = arith.constant 0 : index
    %154 = vector.load %arg10[%c161, %c0_51] : memref<192x96xbf16, #tpu.memory_space<vmem>>, vector<16x32xbf16>
    tpu.vector_store %arg10[%c161, %c0_51], %153 {strides = array<i32>} : memref<192x96xbf16, #tpu.memory_space<vmem>>, vector<16x32xbf16>,
    %155 = vector.broadcast %148 : vector<16x1xf32> to vector<16x32xf32>
    %156 = arith.mulf %123, %155 : vector<16x32xf32>
    %157 = arith.truncf %156 : vector<16x32xf32> to vector<16x32xbf16>
    %c159 = arith.constant 159 : index
    %c64_52 = arith.constant 64 : index
    %158 = vector.load %arg10[%c159, %c64_52] : memref<192x96xbf16, #tpu.memory_space<vmem>>, vector<16x32xbf16>
    tpu.vector_store %arg10[%c159, %c64_52], %157 {strides = array<i32>} : memref<192x96xbf16, #tpu.memory_space<vmem>>, vector<16x32xbf16>,
    %c16_53 = arith.constant 16 : index
    %c0_54 = arith.constant 0 : index
    %159 = vector.load %arg10[%c16_53, %c0_54] : memref<192x96xbf16, #tpu.memory_space<vmem>>, vector<128x96xbf16>
    %c0_55 = arith.constant 0 : index
    %c0_56 = arith.constant 0 : index
    %c0_57 = arith.constant 0 : index
    %160 = vector.load %arg7[%c0_55, %c0_56, %c0_57] : memref<3x96x64xbf16, #tpu.memory_space<vmem>>, vector<1x96x64xbf16>
    %161 = vector.shape_cast %160 : vector<1x96x64xbf16> to vector<96x64xbf16>
    %cst_58 = arith.constant dense<0.000000e+00> : vector<128x64xf32>
    %162 = tpu.matmul %159, %161, %cst_58 {dimension_numbers = #tpu.dot_dimension_numbers<[1], [0], [0], [1], [0, 0, 1, 1], [], []>} : vector<128x96xbf16>, vector<96x64xbf16>, vector<128x64xf32> -> vector<128x64xf32>
    %c32_59 = arith.constant 32 : index
    %c0_60 = arith.constant 0 : index
    %163 = vector.load %arg10[%c32_59, %c0_60] : memref<192x96xbf16, #tpu.memory_space<vmem>>, vector<128x96xbf16>
    %c1 = arith.constant 1 : index
    %c0_61 = arith.constant 0 : index
    %c0_62 = arith.constant 0 : index
    %164 = vector.load %arg7[%c1, %c0_61, %c0_62] : memref<3x96x64xbf16, #tpu.memory_space<vmem>>, vector<1x96x64xbf16>
    %165 = vector.shape_cast %164 : vector<1x96x64xbf16> to vector<96x64xbf16>
    %cst_63 = arith.constant dense<0.000000e+00> : vector<128x64xf32>
    %166 = tpu.matmul %163, %165, %cst_63 {dimension_numbers = #tpu.dot_dimension_numbers<[1], [0], [0], [1], [0, 0, 1, 1], [], []>} : vector<128x96xbf16>, vector<96x64xbf16>, vector<128x64xf32> -> vector<128x64xf32>
    %167 = arith.addf %162, %166 : vector<128x64xf32>
    %c48 = arith.constant 48 : index
    %c0_64 = arith.constant 0 : index
    %168 = vector.load %arg10[%c48, %c0_64] : memref<192x96xbf16, #tpu.memory_space<vmem>>, vector<128x96xbf16>
    %c2 = arith.constant 2 : index
    %c0_65 = arith.constant 0 : index
    %c0_66 = arith.constant 0 : index
    %169 = vector.load %arg7[%c2, %c0_65, %c0_66] : memref<3x96x64xbf16, #tpu.memory_space<vmem>>, vector<1x96x64xbf16>
    %170 = vector.shape_cast %169 : vector<1x96x64xbf16> to vector<96x64xbf16>
    %cst_67 = arith.constant dense<0.000000e+00> : vector<128x64xf32>
    %171 = tpu.matmul %168, %170, %cst_67 {dimension_numbers = #tpu.dot_dimension_numbers<[1], [0], [0], [1], [0, 0, 1, 1], [], []>} : vector<128x96xbf16>, vector<96x64xbf16>, vector<128x64xf32> -> vector<128x64xf32>
    %172 = arith.addf %167, %171 : vector<128x64xf32>
    %c0_68 = arith.constant 0 : index
    %c0_69 = arith.constant 0 : index
    %173 = vector.load %arg8[%c0_68, %c0_69] : memref<1x64xf32, #tpu.memory_space<vmem>>, vector<1x64xf32>
    %174 = vector.broadcast %173 : vector<1x64xf32> to vector<128x64xf32>
    %175 = arith.addf %172, %174 : vector<128x64xf32>
    %176 = vector.shape_cast %175 : vector<128x64xf32> to vector<8x16x64xf32>
    %177 = arith.truncf %176 : vector<8x16x64xf32> to vector<8x16x64xbf16>
    %c0_70 = arith.constant 0 : index
    %c0_71 = arith.constant 0 : index
    %c0_72 = arith.constant 0 : index
    %c0_73 = arith.constant 0 : index
    %178 = vector.load %arg9[%c0_70, %c0_71, %c0_72, %c0_73] : memref<1x8x16x64xbf16, #tpu.memory_space<vmem>>, vector<1x8x16x64xbf16>
    %179 = vector.shape_cast %178 : vector<1x8x16x64xbf16> to vector<8x16x64xbf16>
    %180 = vector.shape_cast %177 : vector<8x16x64xbf16> to vector<1x8x16x64xbf16>
    tpu.vector_store %arg9[%c0_70, %c0_71, %c0_72, %c0_73], %180 {strides = array<i32>} : memref<1x8x16x64xbf16, #tpu.memory_space<vmem>>, vector<1x8x16x64xbf16>,
    return
  }
  func.func @transform_0(%arg0: i32, %arg1: i32) -> (i32, i32, i32, i32) {
    %c8_i32 = arith.constant 8 : i32
    %0 = arith.muli %arg1, %c8_i32 : i32
    %c1_i32 = arith.constant 1 : i32
    %1 = arith.subi %0, %c1_i32 : i32
    %c0_i32 = arith.constant 0 : i32
    %2 = arith.maxsi %1, %c0_i32 : i32
    %c0_i32_0 = arith.constant 0 : i32
    %c0_i32_1 = arith.constant 0 : i32
    %c0_i32_2 = arith.constant 0 : i32
    return %arg0, %2, %c0_i32_0, %c0_i32_1 : i32, i32, i32, i32
  }
  func.func @transform_1(%arg0: i32, %arg1: i32) -> (i32, i32, i32, i32) {
    %c0_i32 = arith.constant 0 : i32
    %c0_i32_0 = arith.constant 0 : i32
    %c0_i32_1 = arith.constant 0 : i32
    return %arg0, %arg1, %c0_i32, %c0_i32_0 : i32, i32, i32, i32
  }
  func.func @transform_2(%arg0: i32, %arg1: i32) -> (i32, i32, i32, i32) {
    %c1_i32 = arith.constant 1 : i32
    %0 = arith.addi %arg1, %c1_i32 : i32
    %c8_i32 = arith.constant 8 : i32
    %1 = arith.muli %0, %c8_i32 : i32
    %c15_i32 = arith.constant 15 : i32
    %2 = arith.minsi %1, %c15_i32 : i32
    %c0_i32 = arith.constant 0 : i32
    %c0_i32_0 = arith.constant 0 : i32
    %c0_i32_1 = arith.constant 0 : i32
    return %arg0, %2, %c0_i32, %c0_i32_0 : i32, i32, i32, i32
  }
  func.func @transform_3(%arg0: i32, %arg1: i32) -> (i32, i32, i32) {
    %c0_i32 = arith.constant 0 : i32
    %c0_i32_0 = arith.constant 0 : i32
    %c0_i32_1 = arith.constant 0 : i32
    return %arg0, %c0_i32, %c0_i32_0 : i32, i32, i32
  }
  func.func @transform_4(%arg0: i32, %arg1: i32) -> (i32, i32, i32) {
    %c0_i32 = arith.constant 0 : i32
    %c0_i32_0 = arith.constant 0 : i32
    %c0_i32_1 = arith.constant 0 : i32
    return %arg0, %c0_i32, %c0_i32_0 : i32, i32, i32
  }
  func.func @transform_5(%arg0: i32, %arg1: i32) -> (i32, i32, i32) {
    %c0_i32 = arith.constant 0 : i32
    %c0_i32_0 = arith.constant 0 : i32
    %c0_i32_1 = arith.constant 0 : i32
    %c0_i32_2 = arith.constant 0 : i32
    return %c0_i32, %c0_i32_0, %c0_i32_1 : i32, i32, i32
  }
  func.func @transform_6(%arg0: i32, %arg1: i32) -> (i32, i32) {
    %c0_i32 = arith.constant 0 : i32
    %c0_i32_0 = arith.constant 0 : i32
    %c0_i32_1 = arith.constant 0 : i32
    return %c0_i32, %c0_i32_0 : i32, i32
  }
  func.func @transform_7(%arg0: i32, %arg1: i32) -> (i32, i32, i32, i32) {
    %c0_i32 = arith.constant 0 : i32
    %c0_i32_0 = arith.constant 0 : i32
    %c0_i32_1 = arith.constant 0 : i32
    return %arg0, %arg1, %c0_i32, %c0_i32_0 : i32, i32, i32, i32
  }
}

</mosaic_0001>

<llo_original>
// kernel: tpu_custom_call.1
$region0: #{tpu_custom_call.1}
  #allocation0 [shape = 'u32[]', space=smem, size = 0x4, offset = 0x4, fixed_abs, tag = 'smem constant byte address 0x4 - core index']
  #allocation1 [shape = 'u32[144,128]{1,0:T(1,128)}', space=vmem, size = 0x12000, scoped, tag = 'internal scratch']
  #allocation2 [shape = 'bf16[192,96]{1,0:T(16,128)(2,1)}', space=vmem, size = 0xc000, scoped, tag = 'scratch operand']
  %s0 = inlined_call_operand.hbm [shape: f32[2,16,16,32], index: 0, kind: input, shape index: {}]
  %s1 = inlined_call_operand.hbm [shape: f32[2,16,16,32], index: 1, kind: input, shape index: {}]
  %s2 = inlined_call_operand.hbm [shape: f32[2,16,16,32], index: 2, kind: input, shape index: {}]
  %s3 = inlined_call_operand.vmem [shape: f32[2,1,32], index: 3, kind: input, shape index: {}]
  %s4 = inlined_call_operand.vmem [shape: f32[2,1,32], index: 4, kind: input, shape index: {}]
  %s5 = inlined_call_operand.vmem [shape: bf16[3,96,64], index: 5, kind: input, shape index: {}]
  %s6 = inlined_call_operand.vmem [shape: f32[1,64], index: 6, kind: input, shape index: {}]
  %s7 = inlined_call_operand.hbm [shape: bf16[2,16,16,64], index: 7, kind: output, shape index: {}]
  %s8 = sld [smem:[#allocation0]]
  $region73: #{tpu_custom_call.1} parent=0
    _
  %s10 = ssub.s32 1, %s8
  %s11 = scalar_select 0, %s10, %s8
  $region1: #{tpu_custom_call.1} parent=0
    #allocation3 [shape = 'u8[16384]{0}', space=vmem, size = 0x4000, scoped, tag = 'input window, operand 0']
    #allocation4 [shape = 's32[2]{0}', space=sflag, size = 0x8, scoped, tag = 'scoped memory for tpu_custom_call.1']
    #allocation5 [shape = 's32[2]{0}', space=sflag, size = 0x8, scoped, tag = 'scoped memory for tpu_custom_call.1']
    #allocation6 [shape = 'u8[131072]{0}', space=vmem, size = 0x20000, scoped, tag = 'input window, operand 1']
    #allocation7 [shape = 's32[2]{0}', space=sflag, size = 0x8, scoped, tag = 'scoped memory for tpu_custom_call.1']
    #allocation8 [shape = 'u8[16384]{0}', space=vmem, size = 0x4000, scoped, tag = 'input window, operand 2']
    #allocation9 [shape = 'u8[65536]{0}', space=vmem, size = 0x10000, scoped, tag = 'output window, operand 0']
    %12 = vsyncpa [#allocation4], 0
    %s13 = scalar_lea.sflag [#allocation4], 1
    %14 = vsyncpa %s13, 0
    %15 = vsyncpa [#allocation7], 0
    %s16 = scalar_lea.sflag [#allocation7], 1
    %17 = vsyncpa %s16, 0
    %18 = vsyncpa [#allocation5], 0
    %s19 = scalar_lea.sflag [#allocation5], 1
    %20 = vsyncpa %s19, 0
    loop: start=0, step=1, limit=6
    $region2: #{tpu_custom_call.1} parent=1 // loop_pre_header
      _
    $region3: #{tpu_custom_call.1} parent=1 // loop_header
      %s22 = sphi 0, %s26
      %p23 = scmp.ge.s32.totalorder %s22, 6
      %s29 = sphi 0, %s41
      %s30 = sphi 0, %s37
      %s31 = sphi 0, %s29
      %s32 = sphi 0, %s30
      %s33 = sphi 0, %s31
      %s34 = sphi 0, %s32
      %s54 = sphi 0, %s56
      %s57 = sphi 0, %s54
      %s58 = sphi 0, %s57
      %s74 = sphi 0, %s58
      %s82 = sphi 0, %s84
      %s85 = sphi 0, %s82
      %s86 = sphi 0, %s85
      %s102 = sphi 0, %s86
      %s118 = sphi 0, %s120
      %s121 = sphi 0, %s118
      %s122 = sphi 0, %s121
      %s138 = sphi 0, %s122
      %s144 = sphi 0, %s146
      %s147 = sphi 0, %s144
      %s148 = sphi 0, %s147
      %s164 = sphi 0, %s148
      %s170 = sphi 0, %s172
      %s173 = sphi 0, %s170
      %s174 = sphi 0, %s173
      %s190 = sphi 0, %s174
      %s194 = sphi 0, %s194
      %s196 = sphi 0, %s194
      %s197 = sphi 0, %s196
      %s211 = sphi 0, %s197
      %s215 = sphi 0, %s215
      %s217 = sphi 0, %s215
      %s218 = sphi 0, %s217
      %s232 = sphi 0, %s218
      %s240 = sphi 0, %s242
      %s243 = sphi 0, %s240
      %s244 = sphi 0, %s243
      %s260 = sphi 0, %s244
    $region4: #{tpu_custom_call.1} parent=1 // loop_header_branch
      %25 = sbr.rel (%p23) target = $region8
    $region5: #{tpu_custom_call.1} parent=1 // loop_body
      %s27 = ssub.s32 %s22, 1
      %s28 = ssub.s32 %s22, 2
      %s35 = sadd.s32 1, %s30
      %p36 = scmp.ge.s32.totalorder %s35, 2
      %s37 = scalar_select %p36, 0, %s35
      %s38 = sadd.s32 1, %s29
      %s39 = scalar_select %p36, %s38, %s29
      %p40 = scmp.ge.s32.totalorder %s39, 2
      %s41 = scalar_select %p40, 0, %s39
      %s42 = smul.u32 %s30, 8
      %s43 = ssub.s32 %s42, 1
      %p44 = scmp.gt.s32.totalorder %s43, 0
      %s45 = scalar_select %p44, %s43, 0
      %s46 = smul.u32 %s37, 8
      %s47 = ssub.s32 %s46, 1
      %p48 = scmp.gt.s32.totalorder %s47, 0
      %s49 = scalar_select %p48, %s47, 0
      %s50 = ssub.s32 %s29, %s41
      %s51 = ssub.s32 %s45, %s49
      %s52 = sor.u32 %s50, %s51
      %p53 = scmp.eq.s32.totalorder %s52, 0
      %s55 = sadd.s32 %s54, 1
      %s56 = scalar_select %p53, %s54, %s55
      %p59 = pneg %p53
      %p60 = scmp.eq.s32.totalorder %s22, 3
      %p61 = por %p59, %p60
      %p62 = scmp.ne.s32.totalorder %s54, %s57
      %p63 = scmp.eq.s32.totalorder %s22, 0
      %p64 = por %p62, %p63
      %p65 = scmp.ne.s32.totalorder %s54, %s57
      %p66 = scmp.eq.s32.totalorder %s27, 3
      %p67 = por %p65, %p66
      %p68 = scmp.ne.s32.totalorder %s57, %s58
      %p69 = scmp.eq.s32.totalorder %s27, 0
      %p70 = por %p68, %p69
      %p71 = scmp.ne.s32.totalorder %s57, %s58
      %p72 = scmp.eq.s32.totalorder %s28, 3
      %p73 = por %p71, %p72
      %p75 = scmp.ne.s32.totalorder %s58, %s74
      %p76 = scmp.eq.s32.totalorder %s28, 0
      %p77 = por %p75, %p76
      %s78 = ssub.s32 %s29, %s41
      %s79 = ssub.s32 %s30, %s37
      %s80 = sor.u32 %s78, %s79
      %p81 = scmp.eq.s32.totalorder %s80, 0
      %s83 = sadd.s32 %s82, 1
      %s84 = scalar_select %p81, %s82, %s83
      %p87 = pneg %p81
      %p88 = scmp.eq.s32.totalorder %s22, 3
      %p89 = por %p87, %p88
      %p90 = scmp.ne.s32.totalorder %s82, %s85
      %p91 = scmp.eq.s32.totalorder %s22, 0
      %p92 = por %p90, %p91
      %p93 = scmp.ne.s32.totalorder %s82, %s85
      %p94 = scmp.eq.s32.totalorder %s27, 3
      %p95 = por %p93, %p94
      %p96 = scmp.ne.s32.totalorder %s85, %s86
      %p97 = scmp.eq.s32.totalorder %s27, 0
      %p98 = por %p96, %p97
      %p99 = scmp.ne.s32.totalorder %s85, %s86
      %p100 = scmp.eq.s32.totalorder %s28, 3
      %p101 = por %p99, %p100
      %p103 = scmp.ne.s32.totalorder %s86, %s102
      %p104 = scmp.eq.s32.totalorder %s28, 0
      %p105 = por %p103, %p104
      %s106 = sadd.s32 %s30, 1
      %s107 = smul.u32 %s106, 8
      %p108 = scmp.lt.s32.totalorder %s107, 15
      %s109 = scalar_select %p108, %s107, 15
      %s110 = sadd.s32 %s37, 1
      %s111 = smul.u32 %s110, 8
      %p112 = scmp.lt.s32.totalorder %s111, 15
      %s113 = scalar_select %p112, %s111, 15
      %s114 = ssub.s32 %s29, %s41
      %s115 = ssub.s32 %s109, %s113
      %s116 = sor.u32 %s114, %s115
      %p117 = scmp.eq.s32.totalorder %s116, 0
      %s119 = sadd.s32 %s118, 1
      %s120 = scalar_select %p117, %s118, %s119
      %p123 = pneg %p117
      %p124 = scmp.eq.s32.totalorder %s22, 3
      %p125 = por %p123, %p124
      %p126 = scmp.ne.s32.totalorder %s118, %s121
      %p127 = scmp.eq.s32.totalorder %s22, 0
      %p128 = por %p126, %p127
      %p129 = scmp.ne.s32.totalorder %s118, %s121
      %p130 = scmp.eq.s32.totalorder %s27, 3
      %p131 = por %p129, %p130
      %p132 = scmp.ne.s32.totalorder %s121, %s122
      %p133 = scmp.eq.s32.totalorder %s27, 0
      %p134 = por %p132, %p133
      %p135 = scmp.ne.s32.totalorder %s121, %s122
      %p136 = scmp.eq.s32.totalorder %s28, 3
      %p137 = por %p135, %p136
      %p139 = scmp.ne.s32.totalorder %s122, %s138
      %p140 = scmp.eq.s32.totalorder %s28, 0
      %p141 = por %p139, %p140
      %s142 = ssub.s32 %s29, %s41
      %p143 = scmp.eq.s32.totalorder %s142, 0
      %s145 = sadd.s32 %s144, 1
      %s146 = scalar_select %p143, %s144, %s145
      %p149 = pneg %p143
      %p150 = scmp.eq.s32.totalorder %s22, 3
      %p151 = por %p149, %p150
      %p152 = scmp.ne.s32.totalorder %s144, %s147
      %p153 = scmp.eq.s32.totalorder %s22, 0
      %p154 = por %p152, %p153
      %p155 = scmp.ne.s32.totalorder %s144, %s147
      %p156 = scmp.eq.s32.totalorder %s27, 3
      %p157 = por %p155, %p156
      %p158 = scmp.ne.s32.totalorder %s147, %s148
      %p159 = scmp.eq.s32.totalorder %s27, 0
      %p160 = por %p158, %p159
      %p161 = scmp.ne.s32.totalorder %s147, %s148
      %p162 = scmp.eq.s32.totalorder %s28, 3
      %p163 = por %p161, %p162
      %p165 = scmp.ne.s32.totalorder %s148, %s164
      %p166 = scmp.eq.s32.totalorder %s28, 0
      %p167 = por %p165, %p166
      %s168 = ssub.s32 %s29, %s41
      %p169 = scmp.eq.s32.totalorder %s168, 0
      %s171 = sadd.s32 %s170, 1
      %s172 = scalar_select %p169, %s170, %s171
      %p175 = pneg %p169
      %p176 = scmp.eq.s32.totalorder %s22, 3
      %p177 = por %p175, %p176
      %p178 = scmp.ne.s32.totalorder %s170, %s173
      %p179 = scmp.eq.s32.totalorder %s22, 0
      %p180 = por %p178, %p179
      %p181 = scmp.ne.s32.totalorder %s170, %s173
      %p182 = scmp.eq.s32.totalorder %s27, 3
      %p183 = por %p181, %p182
      %p184 = scmp.ne.s32.totalorder %s173, %s174
      %p185 = scmp.eq.s32.totalorder %s27, 0
      %p186 = por %p184, %p185
      %p187 = scmp.ne.s32.totalorder %s173, %s174
      %p188 = scmp.eq.s32.totalorder %s28, 3
      %p189 = por %p187, %p188
      %p191 = scmp.ne.s32.totalorder %s174, %s190
      %p192 = scmp.eq.s32.totalorder %s28, 0
      %p193 = por %p191, %p192
      %s195 = sadd.s32 %s194, 1
      %p198 = scmp.eq.s32.totalorder %s22, 3
      %p199 = scmp.ne.s32.totalorder %s194, %s196
      %p200 = scmp.eq.s32.totalorder %s22, 0
      %p201 = por %p199, %p200
      %p202 = scmp.ne.s32.totalorder %s194, %s196
      %p203 = scmp.eq.s32.totalorder %s27, 3
      %p204 = por %p202, %p203
      %p205 = scmp.ne.s32.totalorder %s196, %s197
      %p206 = scmp.eq.s32.totalorder %s27, 0
      %p207 = por %p205, %p206
      %p208 = scmp.ne.s32.totalorder %s196, %s197
      %p209 = scmp.eq.s32.totalorder %s28, 3
      %p210 = por %p208, %p209
      %p212 = scmp.ne.s32.totalorder %s197, %s211
      %p213 = scmp.eq.s32.totalorder %s28, 0
      %p214 = por %p212, %p213
      %s216 = sadd.s32 %s215, 1
      %p219 = scmp.eq.s32.totalorder %s22, 3
      %p220 = scmp.ne.s32.totalorder %s215, %s217
      %p221 = scmp.eq.s32.totalorder %s22, 0
      %p222 = por %p220, %p221
      %p223 = scmp.ne.s32.totalorder %s215, %s217
      %p224 = scmp.eq.s32.totalorder %s27, 3
      %p225 = por %p223, %p224
      %p226 = scmp.ne.s32.totalorder %s217, %s218
      %p227 = scmp.eq.s32.totalorder %s27, 0
      %p228 = por %p226, %p227
      %p229 = scmp.ne.s32.totalorder %s217, %s218
      %p230 = scmp.eq.s32.totalorder %s28, 3
      %p231 = por %p229, %p230
      %p233 = scmp.ne.s32.totalorder %s218, %s232
      %p234 = scmp.eq.s32.totalorder %s28, 0
      %p235 = por %p233, %p234
      %s236 = ssub.s32 %s29, %s41
      %s237 = ssub.s32 %s30, %s37
      %s238 = sor.u32 %s236, %s237
      %p239 = scmp.eq.s32.totalorder %s238, 0
      %s241 = sadd.s32 %s240, 1
      %s242 = scalar_select %p239, %s240, %s241
      %p245 = pneg %p239
      %p246 = scmp.eq.s32.totalorder %s22, 3
      %p247 = por %p245, %p246
      %p248 = scmp.ne.s32.totalorder %s240, %s243
      %p249 = scmp.eq.s32.totalorder %s22, 0
      %p250 = por %p248, %p249
      %p251 = scmp.ne.s32.totalorder %s240, %s243
      %p252 = scmp.eq.s32.totalorder %s27, 3
      %p253 = por %p251, %p252
      %p254 = scmp.ne.s32.totalorder %s243, %s244
      %p255 = scmp.eq.s32.totalorder %s27, 0
      %p256 = por %p254, %p255
      %p257 = scmp.ne.s32.totalorder %s243, %s244
      %p258 = scmp.eq.s32.totalorder %s28, 3
      %p259 = por %p257, %p258
      %p261 = scmp.ne.s32.totalorder %s244, %s260
      %p262 = scmp.eq.s32.totalorder %s28, 0
      %p263 = por %p261, %p262
      %p264 = scmp.le.s32.totalorder 1, %s22
      %p265 = scmp.lt.s32.totalorder %s22, 5
      %p266 = pnand %p264, %p265
      %p267 = pneg %p266
      // Predicated region
      $region9: #{tpu_custom_call.1} parent=5 // pred_check
        _
      $region10: #{tpu_custom_call.1} parent=5 // pred_check_branch
        %269 = sbr.rel (%p266) target = $region12
      $region11: #{tpu_custom_call.1} parent=5 // pred_region
        %s270 = ssub.s32 %s22, 1
        // Predicated region
        $region13: #{tpu_custom_call.1} parent=11 // pred_check
          %p271 = pneg %p207
        $region14: #{tpu_custom_call.1} parent=11 // pred_check_branch
          %273 = sbr.rel (%p271) target = $region16
        $region15: #{tpu_custom_call.1} parent=11 // pred_region
          _
        $region16: #{tpu_custom_call.1} parent=11 // pred_fallthru
          _
        // Predicated region
        $region17: #{tpu_custom_call.1} parent=11 // pred_check
          %p274 = pneg %p228
        $region18: #{tpu_custom_call.1} parent=11 // pred_check_branch
          %276 = sbr.rel (%p274) target = $region20
        $region19: #{tpu_custom_call.1} parent=11 // pred_region
          _
        $region20: #{tpu_custom_call.1} parent=11 // pred_fallthru
          _
      $region12: #{tpu_custom_call.1} parent=5 // pred_fallthru
        _
      %p277 = scmp.lt.s32.totalorder %s22, 4
      // Predicated region
      $region21: #{tpu_custom_call.1} parent=5 // pred_check
        %p278 = pneg %p277
      $region22: #{tpu_custom_call.1} parent=5 // pred_check_branch
        %280 = sbr.rel (%p278) target = $region24
      $region23: #{tpu_custom_call.1} parent=5 // pred_region
        // Predicated region
        $region25: #{tpu_custom_call.1} parent=23 // pred_check
          %p281 = pneg %p64
        $region26: #{tpu_custom_call.1} parent=23 // pred_check_branch
          %283 = sbr.rel (%p281) target = $region28
        $region27: #{tpu_custom_call.1} parent=23 // pred_region
          %s284 = sand.u32 %s54, 1
          %s285 = scalar_lea.sflag [#allocation4], %s284
          %s286 = sand.u32 %s54, 1
          %s287 = smul.addr %s286, 16
          %s288 = scalar_lea.vmem [#allocation3], %s287
          %s289 = smul.u32 %s30, 8
          %s290 = ssub.s32 %s289, 1
          %p291 = scmp.gt.s32.totalorder %s290, 0
          %s292 = scalar_select %p291, %s290, 0
          %s294 = ssub.s32 256, 256
          %295 = vsyncadd %s285, %s294
          %s296 = smul.addr %s292, 2
          %s297 = smul.addr %s29, 32
          %s298 = sadd.s32 %s296, %s297
          %s299 = smul.addr %s298, 128
          %s300 = scalar_lea.hbm %s0, %s299
          %s301 = sshll.u32 %s288, 4
          %s302 = int_to_ptr.vmem [resolvable:$true] %s301
          %307 = dma.hbm_to_vmem [thread:$0]  %s300, 256, %s302, %s285, 128, 128, 8
        $region28: #{tpu_custom_call.1} parent=23 // pred_fallthru
          _
        // Predicated region
        $region29: #{tpu_custom_call.1} parent=23 // pred_check
          %p308 = pneg %p92
        $region30: #{tpu_custom_call.1} parent=23 // pred_check_branch
          %310 = sbr.rel (%p308) target = $region32
        $region31: #{tpu_custom_call.1} parent=23 // pred_region
          %s311 = sand.u32 %s22, 1
          %s312 = scalar_lea.sflag [#allocation7], %s311
          %s313 = sand.u32 %s82, 1
          %s314 = smul.addr %s313, 128
          %s315 = scalar_lea.vmem [#allocation6], %s314
          %s316 = smul.u32 8, %s30
          %s318 = ssub.s32 2048, 2048
          %319 = vsyncadd %s312, %s318
          %s320 = smul.addr %s316, 2
          %s321 = smul.addr %s29, 32
          %s322 = sadd.s32 %s320, %s321
          %s323 = smul.addr %s322, 128
          %s324 = scalar_lea.hbm %s1, %s323
          %s325 = sshll.u32 %s315, 4
          %s326 = int_to_ptr.vmem [resolvable:$true] %s325
          %331 = dma.hbm_to_vmem [thread:$0]  %s324, 2048, %s326, %s312, 128, 128, 8
        $region32: #{tpu_custom_call.1} parent=23 // pred_fallthru
          _
        // Predicated region
        $region33: #{tpu_custom_call.1} parent=23 // pred_check
          %p332 = pneg %p128
        $region34: #{tpu_custom_call.1} parent=23 // pred_check_branch
          %334 = sbr.rel (%p332) target = $region36
        $region35: #{tpu_custom_call.1} parent=23 // pred_region
          %s335 = sand.u32 %s22, 1
          %s336 = scalar_lea.sflag [#allocation7], %s335
          %s337 = sand.u32 %s118, 1
          %s338 = smul.addr %s337, 16
          %s339 = scalar_lea.vmem [#allocation8], %s338
          %s340 = sadd.s32 %s30, 1
          %s341 = smul.u32 %s340, 8
          %p342 = scmp.lt.s32.totalorder %s341, 15
          %s343 = scalar_select %p342, %s341, 15
          %s345 = ssub.s32 256, 256
          %346 = vsyncadd %s336, %s345
          %s347 = smul.addr %s343, 2
          %s348 = smul.addr %s29, 32
          %s349 = sadd.s32 %s347, %s348
          %s350 = smul.addr %s349, 128
          %s351 = scalar_lea.hbm %s2, %s350
          %s352 = sshll.u32 %s339, 4
          %s353 = int_to_ptr.vmem [resolvable:$true] %s352
          %358 = dma.hbm_to_vmem [thread:$0]  %s351, 256, %s353, %s336, 128, 128, 8
        $region36: #{tpu_custom_call.1} parent=23 // pred_fallthru
          _
        // Predicated region
        $region37: #{tpu_custom_call.1} parent=23 // pred_check
          %p359 = pneg %p154
        $region38: #{tpu_custom_call.1} parent=23 // pred_check_branch
          %361 = sbr.rel (%p359) target = $region40
        $region39: #{tpu_custom_call.1} parent=23 // pred_region
          %p362 = scmp.lt.s32.totalorder %s29, 1
          %s363 = scalar_select %p362, %s29, 1
          %s364 = scalar_lea.vmem %s3, %s363
        $region40: #{tpu_custom_call.1} parent=23 // pred_fallthru
          _
        // Predicated region
        $region41: #{tpu_custom_call.1} parent=23 // pred_check
          %p365 = pneg %p180
        $region42: #{tpu_custom_call.1} parent=23 // pred_check_branch
          %367 = sbr.rel (%p365) target = $region44
        $region43: #{tpu_custom_call.1} parent=23 // pred_region
          %p368 = scmp.lt.s32.totalorder %s29, 1
          %s369 = scalar_select %p368, %s29, 1
          %s370 = scalar_lea.vmem %s4, %s369
        $region44: #{tpu_custom_call.1} parent=23 // pred_fallthru
          _
      $region24: #{tpu_custom_call.1} parent=5 // pred_fallthru
        _
      %p371 = scmp.le.s32.totalorder 1, %s22
      %p372 = scmp.lt.s32.totalorder %s22, 5
      %p373 = pnand %p371, %p372
      %p374 = pneg %p373
      // Predicated region
      $region45: #{tpu_custom_call.1} parent=5 // pred_check
        _
      $region46: #{tpu_custom_call.1} parent=5 // pred_check_branch
        %376 = sbr.rel (%p373) target = $region48
      $region47: #{tpu_custom_call.1} parent=5 // pred_region
        %s377 = ssub.s32 %s22, 1
        %s378 = sand.u32 %s57, 1
        %s379 = scalar_lea.sflag [#allocation4], %s378
        %s380 = sand.u32 %s57, 1
        %s381 = smul.addr %s380, 16
        %s382 = scalar_lea.vmem [#allocation3], %s381
        // Predicated region
        $region49: #{tpu_custom_call.1} parent=47 // pred_check
          %p383 = pneg %p70
        $region50: #{tpu_custom_call.1} parent=47 // pred_check_branch
          %385 = sbr.rel (%p383) target = $region52
        $region51: #{tpu_custom_call.1} parent=47 // pred_region
          %386 = dma.done %s379, 256
        $region52: #{tpu_custom_call.1} parent=47 // pred_fallthru
          _
        %s387 = sand.u32 %s27, 1
        %s388 = scalar_lea.sflag [#allocation7], %s387
        %s389 = sand.u32 %s85, 1
        %s390 = smul.addr %s389, 128
        %s391 = scalar_lea.vmem [#allocation6], %s390
        // Predicated region
        $region53: #{tpu_custom_call.1} parent=47 // pred_check
          %p392 = pneg %p98
        $region54: #{tpu_custom_call.1} parent=47 // pred_check_branch
          %394 = sbr.rel (%p392) target = $region56
        $region55: #{tpu_custom_call.1} parent=47 // pred_region
          %395 = dma.done %s388, 2048
        $region56: #{tpu_custom_call.1} parent=47 // pred_fallthru
          _
        %s396 = sand.u32 %s27, 1
        %s397 = scalar_lea.sflag [#allocation7], %s396
        %s398 = sand.u32 %s121, 1
        %s399 = smul.addr %s398, 16
        %s400 = scalar_lea.vmem [#allocation8], %s399
        // Predicated region
        $region57: #{tpu_custom_call.1} parent=47 // pred_check
          %p401 = pneg %p134
        $region58: #{tpu_custom_call.1} parent=47 // pred_check_branch
          %403 = sbr.rel (%p401) target = $region60
        $region59: #{tpu_custom_call.1} parent=47 // pred_region
          %404 = dma.done %s397, 256
        $region60: #{tpu_custom_call.1} parent=47 // pred_fallthru
          _
        %s405 = sand.u32 %s57, 1
        %s406 = scalar_lea.sflag [#allocation4], %s405
        %s407 = sand.u32 %s57, 1
        %s408 = smul.addr %s407, 16
        %s409 = scalar_lea.vmem [#allocation3], %s408
        %p410 = pneg %p70
        %p411 = pneg %p67
        %s412 = sand.u32 %s27, 1
        %s413 = scalar_lea.sflag [#allocation7], %s412
        %s414 = sand.u32 %s85, 1
        %s415 = smul.addr %s414, 128
        %s416 = scalar_lea.vmem [#allocation6], %s415
        %p417 = pneg %p98
        %p418 = pneg %p95
        %s419 = sand.u32 %s27, 1
        %s420 = scalar_lea.sflag [#allocation7], %s419
        %s421 = sand.u32 %s121, 1
        %s422 = smul.addr %s421, 16
        %s423 = scalar_lea.vmem [#allocation8], %s422
        %p424 = pneg %p134
        %p425 = pneg %p131
        %p426 = scmp.lt.s32.totalorder %s31, 1
        %s427 = scalar_select %p426, %s31, 1
        %s428 = scalar_lea.vmem %s3, %s427
        %p429 = pneg %p160
        %p430 = pneg %p157
        %p431 = scmp.lt.s32.totalorder %s31, 1
        %s432 = scalar_select %p431, %s31, 1
        %s433 = scalar_lea.vmem %s4, %s432
        %p434 = pneg %p186
        %p435 = pneg %p183
        %p436 = pneg %p207
        %p437 = pneg %p204
        %p438 = pneg %p228
        %p439 = pneg %p225
        %p440 = pneg %p256
        %p441 = pneg %p253
        %s442 = sand.u32 %s243, 1
        %s443 = scalar_lea.sflag [#allocation5], %s442
        %s444 = sand.u32 %s243, 1
        %s445 = smul.addr %s444, 64
        %s446 = scalar_lea.vmem [#allocation9], %s445
        %s447 = smul.u32 %s32, 8
        %s448 = ssub.s32 %s447, 1
        %p449 = scmp.gt.s32.totalorder %s448, 0
        %s450 = scalar_select %p449, %s448, 0
        %s451 = smul.u32 8, %s32
        %s452 = sadd.s32 %s32, 1
        %s453 = smul.u32 %s452, 8
        %p454 = scmp.lt.s32.totalorder %s453, 15
        %s455 = scalar_select %p454, %s453, 15
        %p456 = scmp.lt.s32.totalorder %s31, 1
        %s457 = scalar_select %p456, %s31, 1
        %s458 = scalar_lea.vmem %s3, %s457
        %p459 = scmp.lt.s32.totalorder %s31, 1
        %s460 = scalar_select %p459, %s31, 1
        %s461 = scalar_lea.vmem %s4, %s460
        %s462 = smul.u32 8, %s32
        %v464 = vld [vmem:[%s458] sm:$0x1]
        %v465 = vld [vmem:[%s461] sm:$0x1]
        %vm466 = vcmask 778240
        %vm467 = vsmask.f32 256
        %vm468 = vmand %vm466, %vm467
        %v469 = vld [vmem:[#allocation2 + $0x8] sm:$0x1]
        %v470 = vsel %vm468, 0, %v469
        %471 = vst [vmem:[#allocation2 + $0x8] sm:$0x1] %v470
        %vm472 = vcmask 785415
        %vm473 = vsmask.f32 7966
        %vm474 = vmand %vm472, %vm473
        %v475 = vld [vmem:[#allocation2 + $0x50] sm:$0x80]
        %v476 = vsel %vm474, 0, %v475
        %477 = vst [vmem:[#allocation2 + $0x50] sm:$0x80] %v476
        %p478 = scmp.gt.s32.totalorder %s32, 0
        %s479 = scalar_select %p478, 1, 0
        %s480 = scvt.s32.f32 %s479
        %p481 = scmp.lt.s32.totalorder %s32, 1
        %s482 = scalar_select %p481, 1, 0
        %s483 = scvt.s32.f32 %s482
        %v484 = vld [vmem:[%s382] sm:$0xff]
        %v485 = vld [vmem:[%s382 + $0x8] sm:$0xff]
        %v486 = vld [vmem:[%s391] sm:$0xff]
        %v487 = vld [vmem:[%s391 + $0x8] sm:$0xff]
        %v488 = vld [vmem:[%s391 + $0x10] sm:$0xff]
        %v489 = vld [vmem:[%s391 + $0x18] sm:$0xff]
        %v490 = vld [vmem:[%s391 + $0x20] sm:$0xff]
        %v491 = vld [vmem:[%s391 + $0x28] sm:$0xff]
        %v492 = vld [vmem:[%s391 + $0x30] sm:$0xff]
        %v493 = vld [vmem:[%s391 + $0x38] sm:$0xff]
        %v494 = vld [vmem:[%s391 + $0x40] sm:$0xff]
        %v495 = vld [vmem:[%s391 + $0x48] sm:$0xff]
        %v496 = vld [vmem:[%s391 + $0x50] sm:$0xff]
        %v497 = vld [vmem:[%s391 + $0x58] sm:$0xff]
        %v498 = vld [vmem:[%s391 + $0x60] sm:$0xff]
        %v499 = vld [vmem:[%s391 + $0x68] sm:$0xff]
        %v500 = vld [vmem:[%s391 + $0x70] sm:$0xff]
        %v501 = vld [vmem:[%s391 + $0x78] sm:$0xff]
        %v502 = vld [vmem:[%s400] sm:$0xff]
        %v503 = vld [vmem:[%s400 + $0x8] sm:$0xff]
        %v505 = vlaneseq
        %v506 = vshrl.u32 %v505, 7
        %v507 = vsub.s32 0, %v506
        %v508 = vrot.slane %v464, %v507
        %v510 = vmul.f32 %v484, %v508
        %v511 = vmul.f32 %v485, %v508
        %v513 = vlaneseq
        %v514 = vshrl.u32 %v513, 7
        %v515 = vsub.s32 0, %v514
        %v516 = vrot.slane %v465, %v515
        %v518 = vadd.f32 %v510, %v516
        %v519 = vadd.f32 %v511, %v516
        %v520 = vxor.u32 %v518, 2147483648
        %v521 = vxor.u32 %v519, 2147483648
        %v522 = vmul.f32 %v520, 1.442695
        %v523 = vpow.pop %v522
        %v524 = vmul.f32 %v521, 1.442695
        %v525 = vpow.pop %v524
        %v526 = vadd.f32 %v523, 1.0
        %v527 = vadd.f32 %v525, 1.0
        %v528 = vrcp.pop %v526
        %v529 = vmul.f32 1.0, %v528
        %v530 = vrcp.pop %v527
        %v531 = vmul.f32 1.0, %v530
        %v532 = vmul.f32 %v518, %v529
        %v533 = vmul.f32 %v519, %v531
        %v534 = vstv %s480
        %v535 = vmul.f32 %v532, %v534
        %v536 = vmul.f32 %v533, %v534
        %v537 = vlaneseq
        %v538 = vshrl.u32 %v537, 7
        %v539 = vadd.s32 %v538, 8
        %vm540 = vcmp.lt.s32.totalorder %v538, 0
        %v541 = vsub.s32 0, %v538
        %v542 = vsel %vm540, %v541, %v538
        %v543 = vshrl.u32 %v542, 4
        %v544 = vand.u32 %v542, 15
        %v545 = vsub.s32 0, %v544
        %v546 = vsel %vm540, %v545, %v544
        %vm547 = vcmp.lt.s32.totalorder %v539, 0
        %v548 = vsub.s32 0, %v539
        %v549 = vsel %vm547, %v548, %v539
        %v550 = vshrl.u32 %v549, 4
        %v551 = vand.u32 %v549, 15
        %v552 = vsub.s32 0, %v551
        %v553 = vsel %vm547, %v552, %v551
        %vm554 = vcmp.ne.s32.totalorder %v546, 0
        %vm555 = vcmp.ne.s32.totalorder %v553, 0
        %vm556 = vcmp.lt.s32.totalorder %v546, 0
        %vm557 = vcmp.lt.s32.totalorder %v553, 0
        %vm558 = vmand %vm556, %vm554
        %vm559 = vmand %vm557, %vm555
        %v560 = vadd.s32 %v546, 16
        %v561 = vadd.s32 %v553, 16
        %v562 = vsel %vm558, %v560, %v546
        %v563 = vsel %vm559, %v561, %v553
        %vm564 = vcmp.ne.s32.totalorder %v562, 15
        %vm565 = vcmp.ne.s32.totalorder %v563, 15
        %v566 = vsel %vm564, 1, 0
        %v567 = vsel %vm565, 1, 0
        %v568 = vcvt.s32.f32 %v566
        %v569 = vcvt.s32.f32 %v567
        %vm570 = vcmp.ne.s32.totalorder %v562, 0
        %vm571 = vcmp.ne.s32.totalorder %v563, 0
        %v572 = vsel %vm570, 1, 0
        %v573 = vsel %vm571, 1, 0
        %v574 = vcvt.s32.f32 %v572
        %v575 = vcvt.s32.f32 %v573
        %v576 = vpack.c.bf16 %v536, %v535
        %578 = vrot.lane.b32.xlu0 %v576, 32
        %v579 = vpop.permute.xlu0 %578
        %vm581 = vcmask 523520
        %582 = vst.msk [vmem:[#allocation2 + $0x8] sm:$0xff] %vm581, %v579
        %v583 = vmul.f32 %v535, %v568
        %v584 = vmul.f32 %v536, %v569
        %v585 = vpack.c.bf16 %v584, %v583
        %v587 = vshrl.u32 %v585, 16
        %v589 = vrot.slane %v587, 7
        %v590 = vshll.u32 %v585, 16
        %v592 = vor.u32 %v589, %v590
        %vm595 = vcmask 261120
        %vm596 = vsmask.f32 7938
        %vm597 = vmand %vm595, %vm596
        %v598 = vld [vmem:[#allocation2 + $0x8] sm:$0xff]
        %v599 = vsel %vm597, %v592, %v598
        %600 = vst [vmem:[#allocation2 + $0x8] sm:$0xff] %v599
        %vm601 = vcmask 253952
        %vm602 = vmand %vm601, %vm467
        %v603 = vld [vmem:[#allocation2 + $0x10] sm:$0x1]
        %v604 = vsel %vm602, %v589, %v603
        %605 = vst [vmem:[#allocation2 + $0x10] sm:$0x1] %v604
        %v606 = vmul.f32 %v535, %v574
        %v607 = vmul.f32 %v536, %v575
        %v608 = vpack.c.bf16 %v607, %v606
        %v610 = vshll.u32 %v608, 16
        %v612 = vrot.slane %v610, 1
        %v613 = vshrl.u32 %v608, 16
        %v615 = vor.u32 %v613, %v612
        %616 = vrot.lane.b32.xlu0 %v612, 64
        %v617 = vpop.permute.xlu0 %616
        %618 = vrot.lane.b32.xlu0 %v615, 64
        %v619 = vpop.permute.xlu0 %618
        %vm622 = vcmask 785927
        %vm623 = vmand %vm622, %vm473
        %v624 = vld [vmem:[#allocation2] sm:$0x80]
        %v625 = vsel %vm623, %v617, %v624
        %626 = vst [vmem:[#allocation2] sm:$0x80] %v625
        %vm627 = vcmask 785920
        %vm628 = vsmask.f32 7424
        %vm629 = vmand %vm627, %vm628
        %v630 = vld [vmem:[#allocation2 + $0x8] sm:$0xff]
        %v631 = vsel %vm629, %v619, %v630
        %632 = vst [vmem:[#allocation2 + $0x8] sm:$0xff] %v631
        %v633 = vmul.f32 %v486, %v508
        %v634 = vmul.f32 %v487, %v508
        %v635 = vmul.f32 %v488, %v508
        %v636 = vmul.f32 %v489, %v508
        %v637 = vmul.f32 %v490, %v508
        %v638 = vmul.f32 %v491, %v508
        %v639 = vmul.f32 %v492, %v508
        %v640 = vmul.f32 %v493, %v508
        %v641 = vmul.f32 %v494, %v508
        %v642 = vmul.f32 %v495, %v508
        %v643 = vmul.f32 %v496, %v508
        %v644 = vmul.f32 %v497, %v508
        %v645 = vmul.f32 %v498, %v508
        %v646 = vmul.f32 %v499, %v508
        %v647 = vmul.f32 %v500, %v508
        %v648 = vmul.f32 %v501, %v508
        %v649 = vadd.f32 %v633, %v516
        %v650 = vadd.f32 %v634, %v516
        %v651 = vadd.f32 %v635, %v516
        %v652 = vadd.f32 %v636, %v516
        %v653 = vadd.f32 %v637, %v516
        %v654 = vadd.f32 %v638, %v516
        %v655 = vadd.f32 %v639, %v516
        %v656 = vadd.f32 %v640, %v516
        %v657 = vadd.f32 %v641, %v516
        %v658 = vadd.f32 %v642, %v516
        %v659 = vadd.f32 %v643, %v516
        %v660 = vadd.f32 %v644, %v516
        %v661 = vadd.f32 %v645, %v516
        %v662 = vadd.f32 %v646, %v516
        %v663 = vadd.f32 %v647, %v516
        %v664 = vadd.f32 %v648, %v516
        %v665 = vxor.u32 %v649, 2147483648
        %v666 = vxor.u32 %v650, 2147483648
        %v667 = vxor.u32 %v651, 2147483648
        %v668 = vxor.u32 %v652, 2147483648
        %v669 = vxor.u32 %v653, 2147483648
        %v670 = vxor.u32 %v654, 2147483648
        %v671 = vxor.u32 %v655, 2147483648
        %v672 = vxor.u32 %v656, 2147483648
        %v673 = vxor.u32 %v657, 2147483648
        %v674 = vxor.u32 %v658, 2147483648
        %v675 = vxor.u32 %v659, 2147483648
        %v676 = vxor.u32 %v660, 2147483648
        %v677 = vxor.u32 %v661, 2147483648
        %v678 = vxor.u32 %v662, 2147483648
        %v679 = vxor.u32 %v663, 2147483648
        %v680 = vxor.u32 %v664, 2147483648
        %v681 = vmul.f32 %v665, 1.442695
        %v682 = vpow.pop %v681
        %v683 = vmul.f32 %v666, 1.442695
        %v684 = vpow.pop %v683
        %v685 = vmul.f32 %v667, 1.442695
        %v686 = vpow.pop %v685
        %v687 = vmul.f32 %v668, 1.442695
        %v688 = vpow.pop %v687
        %v689 = vmul.f32 %v669, 1.442695
        %v690 = vpow.pop %v689
        %v691 = vmul.f32 %v670, 1.442695
        %v692 = vpow.pop %v691
        %v693 = vmul.f32 %v671, 1.442695
        %v694 = vpow.pop %v693
        %v695 = vmul.f32 %v672, 1.442695
        %v696 = vpow.pop %v695
        %v697 = vmul.f32 %v673, 1.442695
        %v698 = vpow.pop %v697
        %v699 = vmul.f32 %v674, 1.442695
        %v700 = vpow.pop %v699
        %v701 = vmul.f32 %v675, 1.442695
        %v702 = vpow.pop %v701
        %v703 = vmul.f32 %v676, 1.442695
        %v704 = vpow.pop %v703
        %v705 = vmul.f32 %v677, 1.442695
        %v706 = vpow.pop %v705
        %v707 = vmul.f32 %v678, 1.442695
        %v708 = vpow.pop %v707
        %v709 = vmul.f32 %v679, 1.442695
        %v710 = vpow.pop %v709
        %v711 = vmul.f32 %v680, 1.442695
        %v712 = vpow.pop %v711
        %v713 = vadd.f32 %v682, 1.0
        %v714 = vadd.f32 %v684, 1.0
        %v715 = vadd.f32 %v686, 1.0
        %v716 = vadd.f32 %v688, 1.0
        %v717 = vadd.f32 %v690, 1.0
        %v718 = vadd.f32 %v692, 1.0
        %v719 = vadd.f32 %v694, 1.0
        %v720 = vadd.f32 %v696, 1.0
        %v721 = vadd.f32 %v698, 1.0
        %v722 = vadd.f32 %v700, 1.0
        %v723 = vadd.f32 %v702, 1.0
        %v724 = vadd.f32 %v704, 1.0
        %v725 = vadd.f32 %v706, 1.0
        %v726 = vadd.f32 %v708, 1.0
        %v727 = vadd.f32 %v710, 1.0
        %v728 = vadd.f32 %v712, 1.0
        %v729 = vrcp.pop %v713
        %v730 = vmul.f32 1.0, %v729
        %v731 = vrcp.pop %v714
        %v732 = vmul.f32 1.0, %v731
        %v733 = vrcp.pop %v715
        %v734 = vmul.f32 1.0, %v733
        %v735 = vrcp.pop %v716
        %v736 = vmul.f32 1.0, %v735
        %v737 = vrcp.pop %v717
        %v738 = vmul.f32 1.0, %v737
        %v739 = vrcp.pop %v718
        %v740 = vmul.f32 1.0, %v739
        %v741 = vrcp.pop %v719
        %v742 = vmul.f32 1.0, %v741
        %v743 = vrcp.pop %v720
        %v744 = vmul.f32 1.0, %v743
        %v745 = vrcp.pop %v721
        %v746 = vmul.f32 1.0, %v745
        %v747 = vrcp.pop %v722
        %v748 = vmul.f32 1.0, %v747
        %v749 = vrcp.pop %v723
        %v750 = vmul.f32 1.0, %v749
        %v751 = vrcp.pop %v724
        %v752 = vmul.f32 1.0, %v751
        %v753 = vrcp.pop %v725
        %v754 = vmul.f32 1.0, %v753
        %v755 = vrcp.pop %v726
        %v756 = vmul.f32 1.0, %v755
        %v757 = vrcp.pop %v727
        %v758 = vmul.f32 1.0, %v757
        %v759 = vrcp.pop %v728
        %v760 = vmul.f32 1.0, %v759
        %v761 = vmul.f32 %v649, %v730
        %v762 = vmul.f32 %v650, %v732
        %v763 = vmul.f32 %v651, %v734
        %v764 = vmul.f32 %v652, %v736
        %v765 = vmul.f32 %v653, %v738
        %v766 = vmul.f32 %v654, %v740
        %v767 = vmul.f32 %v655, %v742
        %v768 = vmul.f32 %v656, %v744
        %v769 = vmul.f32 %v657, %v746
        %v770 = vmul.f32 %v658, %v748
        %v771 = vmul.f32 %v659, %v750
        %v772 = vmul.f32 %v660, %v752
        %v773 = vmul.f32 %v661, %v754
        %v774 = vmul.f32 %v662, %v756
        %v775 = vmul.f32 %v663, %v758
        %v776 = vmul.f32 %v664, %v760
        %v777 = vadd.s32 %v538, 16
        %v778 = vadd.s32 %v538, 24
        %v779 = vadd.s32 %v538, 32
        %v780 = vadd.s32 %v538, 40
        %v781 = vadd.s32 %v538, 48
        %v782 = vadd.s32 %v538, 56
        %v783 = vadd.s32 %v538, 64
        %v784 = vadd.s32 %v538, 72
        %v785 = vadd.s32 %v538, 80
        %v786 = vadd.s32 %v538, 88
        %v787 = vadd.s32 %v538, 96
        %v788 = vadd.s32 %v538, 104
        %v789 = vadd.s32 %v538, 112
        %v790 = vadd.s32 %v538, 120
        %vm791 = vcmp.lt.s32.totalorder %v777, 0
        %v792 = vsub.s32 0, %v777
        %v793 = vsel %vm791, %v792, %v777
        %v794 = vshrl.u32 %v793, 4
        %v795 = vand.u32 %v793, 15
        %v796 = vsub.s32 0, %v795
        %v797 = vsel %vm791, %v796, %v795
        %vm798 = vcmp.lt.s32.totalorder %v778, 0
        %v799 = vsub.s32 0, %v778
        %v800 = vsel %vm798, %v799, %v778
        %v801 = vshrl.u32 %v800, 4
        %v802 = vand.u32 %v800, 15
        %v803 = vsub.s32 0, %v802
        %v804 = vsel %vm798, %v803, %v802
        %vm805 = vcmp.lt.s32.totalorder %v779, 0
        %v806 = vsub.s32 0, %v779
        %v807 = vsel %vm805, %v806, %v779
        %v808 = vshrl.u32 %v807, 4
        %v809 = vand.u32 %v807, 15
        %v810 = vsub.s32 0, %v809
        %v811 = vsel %vm805, %v810, %v809
        %vm812 = vcmp.lt.s32.totalorder %v780, 0
        %v813 = vsub.s32 0, %v780
        %v814 = vsel %vm812, %v813, %v780
        %v815 = vshrl.u32 %v814, 4
        %v816 = vand.u32 %v814, 15
        %v817 = vsub.s32 0, %v816
        %v818 = vsel %vm812, %v817, %v816
        %vm819 = vcmp.lt.s32.totalorder %v781, 0
        %v820 = vsub.s32 0, %v781
        %v821 = vsel %vm819, %v820, %v781
        %v822 = vshrl.u32 %v821, 4
        %v823 = vand.u32 %v821, 15
        %v824 = vsub.s32 0, %v823
        %v825 = vsel %vm819, %v824, %v823
        %vm826 = vcmp.lt.s32.totalorder %v782, 0
        %v827 = vsub.s32 0, %v782
        %v828 = vsel %vm826, %v827, %v782
        %v829 = vshrl.u32 %v828, 4
        %v830 = vand.u32 %v828, 15
        %v831 = vsub.s32 0, %v830
        %v832 = vsel %vm826, %v831, %v830
        %vm833 = vcmp.lt.s32.totalorder %v783, 0
        %v834 = vsub.s32 0, %v783
        %v835 = vsel %vm833, %v834, %v783
        %v836 = vshrl.u32 %v835, 4
        %v837 = vand.u32 %v835, 15
        %v838 = vsub.s32 0, %v837
        %v839 = vsel %vm833, %v838, %v837
        %vm840 = vcmp.lt.s32.totalorder %v784, 0
        %v841 = vsub.s32 0, %v784
        %v842 = vsel %vm840, %v841, %v784
        %v843 = vshrl.u32 %v842, 4
        %v844 = vand.u32 %v842, 15
        %v845 = vsub.s32 0, %v844
        %v846 = vsel %vm840, %v845, %v844
        %vm847 = vcmp.lt.s32.totalorder %v785, 0
        %v848 = vsub.s32 0, %v785
        %v849 = vsel %vm847, %v848, %v785
        %v850 = vshrl.u32 %v849, 4
        %v851 = vand.u32 %v849, 15
        %v852 = vsub.s32 0, %v851
        %v853 = vsel %vm847, %v852, %v851
        %vm854 = vcmp.lt.s32.totalorder %v786, 0
        %v855 = vsub.s32 0, %v786
        %v856 = vsel %vm854, %v855, %v786
        %v857 = vshrl.u32 %v856, 4
        %v858 = vand.u32 %v856, 15
        %v859 = vsub.s32 0, %v858
        %v860 = vsel %vm854, %v859, %v858
        %vm861 = vcmp.lt.s32.totalorder %v787, 0
        %v862 = vsub.s32 0, %v787
        %v863 = vsel %vm861, %v862, %v787
        %v864 = vshrl.u32 %v863, 4
        %v865 = vand.u32 %v863, 15
        %v866 = vsub.s32 0, %v865
        %v867 = vsel %vm861, %v866, %v865
        %vm868 = vcmp.lt.s32.totalorder %v788, 0
        %v869 = vsub.s32 0, %v788
        %v870 = vsel %vm868, %v869, %v788
        %v871 = vshrl.u32 %v870, 4
        %v872 = vand.u32 %v870, 15
        %v873 = vsub.s32 0, %v872
        %v874 = vsel %vm868, %v873, %v872
        %vm875 = vcmp.lt.s32.totalorder %v789, 0
        %v876 = vsub.s32 0, %v789
        %v877 = vsel %vm875, %v876, %v789
        %v878 = vshrl.u32 %v877, 4
        %v879 = vand.u32 %v877, 15
        %v880 = vsub.s32 0, %v879
        %v881 = vsel %vm875, %v880, %v879
        %vm882 = vcmp.lt.s32.totalorder %v790, 0
        %v883 = vsub.s32 0, %v790
        %v884 = vsel %vm882, %v883, %v790
        %v885 = vshrl.u32 %v884, 4
        %v886 = vand.u32 %v884, 15
        %v887 = vsub.s32 0, %v886
        %v888 = vsel %vm882, %v887, %v886
        %vm889 = vcmp.ne.s32.totalorder %v797, 0
        %vm890 = vcmp.ne.s32.totalorder %v804, 0
        %vm891 = vcmp.ne.s32.totalorder %v811, 0
        %vm892 = vcmp.ne.s32.totalorder %v818, 0
        %vm893 = vcmp.ne.s32.totalorder %v825, 0
        %vm894 = vcmp.ne.s32.totalorder %v832, 0
        %vm895 = vcmp.ne.s32.totalorder %v839, 0
        %vm896 = vcmp.ne.s32.totalorder %v846, 0
        %vm897 = vcmp.ne.s32.totalorder %v853, 0
        %vm898 = vcmp.ne.s32.totalorder %v860, 0
        %vm899 = vcmp.ne.s32.totalorder %v867, 0
        %vm900 = vcmp.ne.s32.totalorder %v874, 0
        %vm901 = vcmp.ne.s32.totalorder %v881, 0
        %vm902 = vcmp.ne.s32.totalorder %v888, 0
        %vm903 = vcmp.lt.s32.totalorder %v797, 0
        %vm904 = vcmp.lt.s32.totalorder %v804, 0
        %vm905 = vcmp.lt.s32.totalorder %v811, 0
        %vm906 = vcmp.lt.s32.totalorder %v818, 0
        %vm907 = vcmp.lt.s32.totalorder %v825, 0
        %vm908 = vcmp.lt.s32.totalorder %v832, 0
        %vm909 = vcmp.lt.s32.totalorder %v839, 0
        %vm910 = vcmp.lt.s32.totalorder %v846, 0
        %vm911 = vcmp.lt.s32.totalorder %v853, 0
        %vm912 = vcmp.lt.s32.totalorder %v860, 0
        %vm913 = vcmp.lt.s32.totalorder %v867, 0
        %vm914 = vcmp.lt.s32.totalorder %v874, 0
        %vm915 = vcmp.lt.s32.totalorder %v881, 0
        %vm916 = vcmp.lt.s32.totalorder %v888, 0
        %vm917 = vmand %vm903, %vm889
        %vm918 = vmand %vm904, %vm890
        %vm919 = vmand %vm905, %vm891
        %vm920 = vmand %vm906, %vm892
        %vm921 = vmand %vm907, %vm893
        %vm922 = vmand %vm908, %vm894
        %vm923 = vmand %vm909, %vm895
        %vm924 = vmand %vm910, %vm896
        %vm925 = vmand %vm911, %vm897
        %vm926 = vmand %vm912, %vm898
        %vm927 = vmand %vm913, %vm899
        %vm928 = vmand %vm914, %vm900
        %vm929 = vmand %vm915, %vm901
        %vm930 = vmand %vm916, %vm902
        %v931 = vadd.s32 %v797, 16
        %v932 = vadd.s32 %v804, 16
        %v933 = vadd.s32 %v811, 16
        %v934 = vadd.s32 %v818, 16
        %v935 = vadd.s32 %v825, 16
        %v936 = vadd.s32 %v832, 16
        %v937 = vadd.s32 %v839, 16
        %v938 = vadd.s32 %v846, 16
        %v939 = vadd.s32 %v853, 16
        %v940 = vadd.s32 %v860, 16
        %v941 = vadd.s32 %v867, 16
        %v942 = vadd.s32 %v874, 16
        %v943 = vadd.s32 %v881, 16
        %v944 = vadd.s32 %v888, 16
        %v945 = vsel %vm917, %v931, %v797
        %v946 = vsel %vm918, %v932, %v804
        %v947 = vsel %vm919, %v933, %v811
        %v948 = vsel %vm920, %v934, %v818
        %v949 = vsel %vm921, %v935, %v825
        %v950 = vsel %vm922, %v936, %v832
        %v951 = vsel %vm923, %v937, %v839
        %v952 = vsel %vm924, %v938, %v846
        %v953 = vsel %vm925, %v939, %v853
        %v954 = vsel %vm926, %v940, %v860
        %v955 = vsel %vm927, %v941, %v867
        %v956 = vsel %vm928, %v942, %v874
        %v957 = vsel %vm929, %v943, %v881
        %v958 = vsel %vm930, %v944, %v888
        %vm959 = vcmp.ne.s32.totalorder %v945, 15
        %vm960 = vcmp.ne.s32.totalorder %v946, 15
        %vm961 = vcmp.ne.s32.totalorder %v947, 15
        %vm962 = vcmp.ne.s32.totalorder %v948, 15
        %vm963 = vcmp.ne.s32.totalorder %v949, 15
        %vm964 = vcmp.ne.s32.totalorder %v950, 15
        %vm965 = vcmp.ne.s32.totalorder %v951, 15
        %vm966 = vcmp.ne.s32.totalorder %v952, 15
        %vm967 = vcmp.ne.s32.totalorder %v953, 15
        %vm968 = vcmp.ne.s32.totalorder %v954, 15
        %vm969 = vcmp.ne.s32.totalorder %v955, 15
        %vm970 = vcmp.ne.s32.totalorder %v956, 15
        %vm971 = vcmp.ne.s32.totalorder %v957, 15
        %vm972 = vcmp.ne.s32.totalorder %v958, 15
        %v973 = vsel %vm959, 1, 0
        %v974 = vsel %vm960, 1, 0
        %v975 = vsel %vm961, 1, 0
        %v976 = vsel %vm962, 1, 0
        %v977 = vsel %vm963, 1, 0
        %v978 = vsel %vm964, 1, 0
        %v979 = vsel %vm965, 1, 0
        %v980 = vsel %vm966, 1, 0
        %v981 = vsel %vm967, 1, 0
        %v982 = vsel %vm968, 1, 0
        %v983 = vsel %vm969, 1, 0
        %v984 = vsel %vm970, 1, 0
        %v985 = vsel %vm971, 1, 0
        %v986 = vsel %vm972, 1, 0
        %v987 = vcvt.s32.f32 %v973
        %v988 = vcvt.s32.f32 %v974
        %v989 = vcvt.s32.f32 %v975
        %v990 = vcvt.s32.f32 %v976
        %v991 = vcvt.s32.f32 %v977
        %v992 = vcvt.s32.f32 %v978
        %v993 = vcvt.s32.f32 %v979
        %v994 = vcvt.s32.f32 %v980
        %v995 = vcvt.s32.f32 %v981
        %v996 = vcvt.s32.f32 %v982
        %v997 = vcvt.s32.f32 %v983
        %v998 = vcvt.s32.f32 %v984
        %v999 = vcvt.s32.f32 %v985
        %v1000 = vcvt.s32.f32 %v986
        %vm1001 = vcmp.ne.s32.totalorder %v945, 0
        %vm1002 = vcmp.ne.s32.totalorder %v946, 0
        %vm1003 = vcmp.ne.s32.totalorder %v947, 0
        %vm1004 = vcmp.ne.s32.totalorder %v948, 0
        %vm1005 = vcmp.ne.s32.totalorder %v949, 0
        %vm1006 = vcmp.ne.s32.totalorder %v950, 0
        %vm1007 = vcmp.ne.s32.totalorder %v951, 0
        %vm1008 = vcmp.ne.s32.totalorder %v952, 0
        %vm1009 = vcmp.ne.s32.totalorder %v953, 0
        %vm1010 = vcmp.ne.s32.totalorder %v954, 0
        %vm1011 = vcmp.ne.s32.totalorder %v955, 0
        %vm1012 = vcmp.ne.s32.totalorder %v956, 0
        %vm1013 = vcmp.ne.s32.totalorder %v957, 0
        %vm1014 = vcmp.ne.s32.totalorder %v958, 0
        %v1015 = vsel %vm1001, 1, 0
        %v1016 = vsel %vm1002, 1, 0
        %v1017 = vsel %vm1003, 1, 0
        %v1018 = vsel %vm1004, 1, 0
        %v1019 = vsel %vm1005, 1, 0
        %v1020 = vsel %vm1006, 1, 0
        %v1021 = vsel %vm1007, 1, 0
        %v1022 = vsel %vm1008, 1, 0
        %v1023 = vsel %vm1009, 1, 0
        %v1024 = vsel %vm1010, 1, 0
        %v1025 = vsel %vm1011, 1, 0
        %v1026 = vsel %vm1012, 1, 0
        %v1027 = vsel %vm1013, 1, 0
        %v1028 = vsel %vm1014, 1, 0
        %v1029 = vcvt.s32.f32 %v1015
        %v1030 = vcvt.s32.f32 %v1016
        %v1031 = vcvt.s32.f32 %v1017
        %v1032 = vcvt.s32.f32 %v1018
        %v1033 = vcvt.s32.f32 %v1019
        %v1034 = vcvt.s32.f32 %v1020
        %v1035 = vcvt.s32.f32 %v1021
        %v1036 = vcvt.s32.f32 %v1022
        %v1037 = vcvt.s32.f32 %v1023
        %v1038 = vcvt.s32.f32 %v1024
        %v1039 = vcvt.s32.f32 %v1025
        %v1040 = vcvt.s32.f32 %v1026
        %v1041 = vcvt.s32.f32 %v1027
        %v1042 = vcvt.s32.f32 %v1028
        %v1043 = vpack.c.bf16 %v762, %v761
        %v1044 = vpack.c.bf16 %v764, %v763
        %v1045 = vpack.c.bf16 %v766, %v765
        %v1046 = vpack.c.bf16 %v768, %v767
        %v1047 = vpack.c.bf16 %v770, %v769
        %v1048 = vpack.c.bf16 %v772, %v771
        %v1049 = vpack.c.bf16 %v774, %v773
        %v1050 = vpack.c.bf16 %v776, %v775
        %1059 = vrot.lane.b32.xlu0 %v1043, 32
        %v1060 = vpop.permute.xlu0 %1059
        %1061 = vrot.lane.b32.xlu0 %v1044, 32
        %v1062 = vpop.permute.xlu0 %1061
        %1063 = vrot.lane.b32.xlu0 %v1045, 32
        %v1064 = vpop.permute.xlu0 %1063
        %1065 = vrot.lane.b32.xlu0 %v1046, 32
        %v1066 = vpop.permute.xlu0 %1065
        %1067 = vrot.lane.b32.xlu0 %v1047, 32
        %v1068 = vpop.permute.xlu0 %1067
        %1069 = vrot.lane.b32.xlu0 %v1048, 32
        %v1070 = vpop.permute.xlu0 %1069
        %1071 = vrot.lane.b32.xlu0 %v1049, 32
        %v1072 = vpop.permute.xlu0 %1071
        %1073 = vrot.lane.b32.xlu0 %v1050, 32
        %v1074 = vpop.permute.xlu0 %1073
        %1083 = vst.msk [vmem:[#allocation2 + $0x10] sm:$0xff] %vm581, %v1060
        %1084 = vst.msk [vmem:[#allocation2 + $0x18] sm:$0xff] %vm581, %v1062
        %1085 = vst.msk [vmem:[#allocation2 + $0x20] sm:$0xff] %vm581, %v1064
        %1086 = vst.msk [vmem:[#allocation2 + $0x28] sm:$0xff] %vm581, %v1066
        %1087 = vst.msk [vmem:[#allocation2 + $0x30] sm:$0xff] %vm581, %v1068
        %1088 = vst.msk [vmem:[#allocation2 + $0x38] sm:$0xff] %vm581, %v1070
        %1089 = vst.msk [vmem:[#allocation2 + $0x40] sm:$0xff] %vm581, %v1072
        %1090 = vst.msk [vmem:[#allocation2 + $0x48] sm:$0xff] %vm581, %v1074
        %v1091 = vmul.f32 %v761, %v568
        %v1092 = vmul.f32 %v762, %v569
        %v1093 = vmul.f32 %v763, %v987
        %v1094 = vmul.f32 %v764, %v988
        %v1095 = vmul.f32 %v765, %v989
        %v1096 = vmul.f32 %v766, %v990
        %v1097 = vmul.f32 %v767, %v991
        %v1098 = vmul.f32 %v768, %v992
        %v1099 = vmul.f32 %v769, %v993
        %v1100 = vmul.f32 %v770, %v994
        %v1101 = vmul.f32 %v771, %v995
        %v1102 = vmul.f32 %v772, %v996
        %v1103 = vmul.f32 %v773, %v997
        %v1104 = vmul.f32 %v774, %v998
        %v1105 = vmul.f32 %v775, %v999
        %v1106 = vmul.f32 %v776, %v1000
        %v1107 = vpack.c.bf16 %v1092, %v1091
        %v1108 = vpack.c.bf16 %v1094, %v1093
        %v1109 = vpack.c.bf16 %v1096, %v1095
        %v1110 = vpack.c.bf16 %v1098, %v1097
        %v1111 = vpack.c.bf16 %v1100, %v1099
        %v1112 = vpack.c.bf16 %v1102, %v1101
        %v1113 = vpack.c.bf16 %v1104, %v1103
        %v1114 = vpack.c.bf16 %v1106, %v1105
        %v1116 = vshrl.u32 %v1107, 16
        %v1118 = vrot.slane %v1116, 7
        %v1119 = vshll.u32 %v1107, 16
        %v1121 = vor.u32 %v1118, %v1119
        %v1123 = vshrl.u32 %v1108, 16
        %v1125 = vrot.slane %v1123, 7
        %v1126 = vshll.u32 %v1108, 16
        %v1128 = vor.u32 %v1125, %v1126
        %v1129 = vsel %vm467, %v1118, %v1128
        %v1131 = vshrl.u32 %v1109, 16
        %v1133 = vrot.slane %v1131, 7
        %v1134 = vshll.u32 %v1109, 16
        %v1136 = vor.u32 %v1133, %v1134
        %v1137 = vsel %vm467, %v1125, %v1136
        %v1139 = vshrl.u32 %v1110, 16
        %v1141 = vrot.slane %v1139, 7
        %v1142 = vshll.u32 %v1110, 16
        %v1144 = vor.u32 %v1141, %v1142
        %v1145 = vsel %vm467, %v1133, %v1144
        %v1147 = vshrl.u32 %v1111, 16
        %v1149 = vrot.slane %v1147, 7
        %v1150 = vshll.u32 %v1111, 16
        %v1152 = vor.u32 %v1149, %v1150
        %v1153 = vsel %vm467, %v1141, %v1152
        %v1155 = vshrl.u32 %v1112, 16
        %v1157 = vrot.slane %v1155, 7
        %v1158 = vshll.u32 %v1112, 16
        %v1160 = vor.u32 %v1157, %v1158
        %v1161 = vsel %vm467, %v1149, %v1160
        %v1163 = vshrl.u32 %v1113, 16
        %v1165 = vrot.slane %v1163, 7
        %v1166 = vshll.u32 %v1113, 16
        %v1168 = vor.u32 %v1165, %v1166
        %v1169 = vsel %vm467, %v1157, %v1168
        %v1171 = vshrl.u32 %v1114, 16
        %v1173 = vrot.slane %v1171, 7
        %v1174 = vshll.u32 %v1114, 16
        %v1176 = vor.u32 %v1173, %v1174
        %v1177 = vsel %vm467, %v1165, %v1176
        %v1187 = vld [vmem:[#allocation2 + $0x10] sm:$0xff]
        %v1188 = vsel %vm597, %v1121, %v1187
        %1189 = vst [vmem:[#allocation2 + $0x10] sm:$0xff] %v1188
        %vm1190 = vcmask 261120
        %1191 = vst.msk [vmem:[#allocation2 + $0x18] sm:$0xff] %vm1190, %v1129
        %1192 = vst.msk [vmem:[#allocation2 + $0x20] sm:$0xff] %vm1190, %v1137
        %1193 = vst.msk [vmem:[#allocation2 + $0x28] sm:$0xff] %vm1190, %v1145
        %1194 = vst.msk [vmem:[#allocation2 + $0x30] sm:$0xff] %vm1190, %v1153
        %1195 = vst.msk [vmem:[#allocation2 + $0x38] sm:$0xff] %vm1190, %v1161
        %1196 = vst.msk [vmem:[#allocation2 + $0x40] sm:$0xff] %vm1190, %v1169
        %1197 = vst.msk [vmem:[#allocation2 + $0x48] sm:$0xff] %vm1190, %v1177
        %v1198 = vld [vmem:[#allocation2 + $0x50] sm:$0x1]
        %v1199 = vsel %vm602, %v1173, %v1198
        %1200 = vst [vmem:[#allocation2 + $0x50] sm:$0x1] %v1199
        %v1201 = vmul.f32 %v761, %v574
        %v1202 = vmul.f32 %v762, %v575
        %v1203 = vmul.f32 %v763, %v1029
        %v1204 = vmul.f32 %v764, %v1030
        %v1205 = vmul.f32 %v765, %v1031
        %v1206 = vmul.f32 %v766, %v1032
        %v1207 = vmul.f32 %v767, %v1033
        %v1208 = vmul.f32 %v768, %v1034
        %v1209 = vmul.f32 %v769, %v1035
        %v1210 = vmul.f32 %v770, %v1036
        %v1211 = vmul.f32 %v771, %v1037
        %v1212 = vmul.f32 %v772, %v1038
        %v1213 = vmul.f32 %v773, %v1039
        %v1214 = vmul.f32 %v774, %v1040
        %v1215 = vmul.f32 %v775, %v1041
        %v1216 = vmul.f32 %v776, %v1042
        %v1217 = vpack.c.bf16 %v1202, %v1201
        %v1218 = vpack.c.bf16 %v1204, %v1203
        %v1219 = vpack.c.bf16 %v1206, %v1205
        %v1220 = vpack.c.bf16 %v1208, %v1207
        %v1221 = vpack.c.bf16 %v1210, %v1209
        %v1222 = vpack.c.bf16 %v1212, %v1211
        %v1223 = vpack.c.bf16 %v1214, %v1213
        %v1224 = vpack.c.bf16 %v1216, %v1215
        %v1226 = vshll.u32 %v1217, 16
        %v1228 = vrot.slane %v1226, 1
        %v1229 = vshrl.u32 %v1217, 16
        %v1231 = vor.u32 %v1229, %v1228
        %v1233 = vshll.u32 %v1218, 16
        %v1235 = vrot.slane %v1233, 1
        %v1236 = vsel %vm628, %v1231, %v1235
        %v1237 = vshrl.u32 %v1218, 16
        %v1239 = vor.u32 %v1237, %v1235
        %v1241 = vshll.u32 %v1219, 16
        %v1243 = vrot.slane %v1241, 1
        %v1244 = vsel %vm628, %v1239, %v1243
        %v1245 = vshrl.u32 %v1219, 16
        %v1247 = vor.u32 %v1245, %v1243
        %v1249 = vshll.u32 %v1220, 16
        %v1251 = vrot.slane %v1249, 1
        %v1252 = vsel %vm628, %v1247, %v1251
        %v1253 = vshrl.u32 %v1220, 16
        %v1255 = vor.u32 %v1253, %v1251
        %v1257 = vshll.u32 %v1221, 16
        %v1259 = vrot.slane %v1257, 1
        %v1260 = vsel %vm628, %v1255, %v1259
        %v1261 = vshrl.u32 %v1221, 16
        %v1263 = vor.u32 %v1261, %v1259
        %v1265 = vshll.u32 %v1222, 16
        %v1267 = vrot.slane %v1265, 1
        %v1268 = vsel %vm628, %v1263, %v1267
        %v1269 = vshrl.u32 %v1222, 16
        %v1271 = vor.u32 %v1269, %v1267
        %v1273 = vshll.u32 %v1223, 16
        %v1275 = vrot.slane %v1273, 1
        %v1276 = vsel %vm628, %v1271, %v1275
        %v1277 = vshrl.u32 %v1223, 16
        %v1279 = vor.u32 %v1277, %v1275
        %v1281 = vshll.u32 %v1224, 16
        %v1283 = vrot.slane %v1281, 1
        %v1284 = vsel %vm628, %v1279, %v1283
        %v1285 = vshrl.u32 %v1224, 16
        %v1287 = vor.u32 %v1285, %v1283
        %1288 = vrot.lane.b32.xlu0 %v1228, 64
        %v1289 = vpop.permute.xlu0 %1288
        %1290 = vrot.lane.b32.xlu0 %v1236, 64
        %v1291 = vpop.permute.xlu0 %1290
        %1292 = vrot.lane.b32.xlu0 %v1244, 64
        %v1293 = vpop.permute.xlu0 %1292
        %1294 = vrot.lane.b32.xlu0 %v1252, 64
        %v1295 = vpop.permute.xlu0 %1294
        %1296 = vrot.lane.b32.xlu0 %v1260, 64
        %v1297 = vpop.permute.xlu0 %1296
        %1298 = vrot.lane.b32.xlu0 %v1268, 64
        %v1299 = vpop.permute.xlu0 %1298
        %1300 = vrot.lane.b32.xlu0 %v1276, 64
        %v1301 = vpop.permute.xlu0 %1300
        %1302 = vrot.lane.b32.xlu0 %v1284, 64
        %v1303 = vpop.permute.xlu0 %1302
        %1304 = vrot.lane.b32.xlu0 %v1287, 64
        %v1305 = vpop.permute.xlu0 %1304
        %v1315 = vld [vmem:[#allocation2 + $0x8] sm:$0x80]
        %v1316 = vsel %vm623, %v1289, %v1315
        %1317 = vst [vmem:[#allocation2 + $0x8] sm:$0x80] %v1316
        %vm1318 = vcmask 785920
        %1319 = vst.msk [vmem:[#allocation2 + $0x10] sm:$0xff] %vm1318, %v1291
        %1320 = vst.msk [vmem:[#allocation2 + $0x18] sm:$0xff] %vm1318, %v1293
        %1321 = vst.msk [vmem:[#allocation2 + $0x20] sm:$0xff] %vm1318, %v1295
        %1322 = vst.msk [vmem:[#allocation2 + $0x28] sm:$0xff] %vm1318, %v1297
        %1323 = vst.msk [vmem:[#allocation2 + $0x30] sm:$0xff] %vm1318, %v1299
        %1324 = vst.msk [vmem:[#allocation2 + $0x38] sm:$0xff] %vm1318, %v1301
        %1325 = vst.msk [vmem:[#allocation2 + $0x40] sm:$0xff] %vm1318, %v1303
        %v1326 = vld [vmem:[#allocation2 + $0x48] sm:$0xff]
        %v1327 = vsel %vm629, %v1305, %v1326
        %1328 = vst [vmem:[#allocation2 + $0x48] sm:$0xff] %v1327
        %v1329 = vmul.f32 %v502, %v508
        %v1330 = vmul.f32 %v503, %v508
        %v1331 = vadd.f32 %v1329, %v516
        %v1332 = vadd.f32 %v1330, %v516
        %v1333 = vxor.u32 %v1331, 2147483648
        %v1334 = vxor.u32 %v1332, 2147483648
        %v1335 = vmul.f32 %v1333, 1.442695
        %v1336 = vpow.pop %v1335
        %v1337 = vmul.f32 %v1334, 1.442695
        %v1338 = vpow.pop %v1337
        %v1339 = vadd.f32 %v1336, 1.0
        %v1340 = vadd.f32 %v1338, 1.0
        %v1341 = vrcp.pop %v1339
        %v1342 = vmul.f32 1.0, %v1341
        %v1343 = vrcp.pop %v1340
        %v1344 = vmul.f32 1.0, %v1343
        %v1345 = vmul.f32 %v1331, %v1342
        %v1346 = vmul.f32 %v1332, %v1344
        %v1347 = vstv %s483
        %v1348 = vmul.f32 %v1345, %v1347
        %v1349 = vmul.f32 %v1346, %v1347
        %v1350 = vpack.c.bf16 %v1349, %v1348
        %1352 = vrot.lane.b32.xlu0 %v1350, 32
        %v1353 = vpop.permute.xlu0 %1352
        %1355 = vst.msk [vmem:[#allocation2 + $0x50] sm:$0xff] %vm581, %v1353
        %v1356 = vmul.f32 %v1348, %v568
        %v1357 = vmul.f32 %v1349, %v569
        %v1358 = vpack.c.bf16 %v1357, %v1356
        %v1360 = vshrl.u32 %v1358, 16
        %v1362 = vrot.slane %v1360, 7
        %v1363 = vshll.u32 %v1358, 16
        %v1365 = vor.u32 %v1362, %v1363
        %v1368 = vld [vmem:[#allocation2 + $0x50] sm:$0xff]
        %v1369 = vsel %vm597, %v1365, %v1368
        %1370 = vst [vmem:[#allocation2 + $0x50] sm:$0xff] %v1369
        %v1371 = vld [vmem:[#allocation2 + $0x58] sm:$0x1]
        %v1372 = vsel %vm602, %v1362, %v1371
        %1373 = vst [vmem:[#allocation2 + $0x58] sm:$0x1] %v1372
        %v1374 = vmul.f32 %v1348, %v574
        %v1375 = vmul.f32 %v1349, %v575
        %v1376 = vpack.c.bf16 %v1375, %v1374
        %v1378 = vshll.u32 %v1376, 16
        %v1380 = vrot.slane %v1378, 1
        %v1381 = vshrl.u32 %v1376, 16
        %v1383 = vor.u32 %v1381, %v1380
        %1384 = vrot.lane.b32.xlu0 %v1380, 64
        %v1385 = vpop.permute.xlu0 %1384
        %1386 = vrot.lane.b32.xlu0 %v1383, 64
        %v1387 = vpop.permute.xlu0 %1386
        %v1390 = vld [vmem:[#allocation2 + $0x48] sm:$0x80]
        %v1391 = vsel %vm623, %v1385, %v1390
        %1392 = vst [vmem:[#allocation2 + $0x48] sm:$0x80] %v1391
        %v1393 = vld [vmem:[#allocation2 + $0x50] sm:$0xff]
        %v1394 = vsel %vm629, %v1387, %v1393
        %1395 = vst [vmem:[#allocation2 + $0x50] sm:$0xff] %v1394
        %v1396 = vld [vmem:[#allocation2 + $0x8] sm:$0xff]
        %v1397 = vld [vmem:[#allocation2 + $0x10] sm:$0xff]
        %v1398 = vld [vmem:[#allocation2 + $0x18] sm:$0xff]
        %v1399 = vld [vmem:[#allocation2 + $0x20] sm:$0xff]
        %v1400 = vld [vmem:[#allocation2 + $0x28] sm:$0xff]
        %v1401 = vld [vmem:[#allocation2 + $0x30] sm:$0xff]
        %v1402 = vld [vmem:[#allocation2 + $0x38] sm:$0xff]
        %v1403 = vld [vmem:[#allocation2 + $0x40] sm:$0xff]
        %v1404 = vld [vmem:[%s5] sm:$0xf]
        %v1405 = vld [vmem:[%s5 + $0x4] sm:$0xf]
        %v1406 = vld [vmem:[%s5 + $0x8] sm:$0xf]
        %v1407 = vld [vmem:[%s5 + $0xc] sm:$0xf]
        %v1408 = vld [vmem:[%s5 + $0x10] sm:$0xf]
        %v1409 = vld [vmem:[%s5 + $0x14] sm:$0xf]
        %v1410 = vld [vmem:[%s5 + $0x18] sm:$0xf]
        %v1411 = vld [vmem:[%s5 + $0x1c] sm:$0xf]
        %v1412 = vld [vmem:[%s5 + $0x20] sm:$0xf]
        %v1413 = vld [vmem:[%s5 + $0x24] sm:$0xf]
        %v1414 = vld [vmem:[%s5 + $0x28] sm:$0xf]
        %v1415 = vld [vmem:[%s5 + $0x2c] sm:$0xf]
        %v1416 = vld [vmem:[#allocation2 + $0x48] sm:$0xff]
        %s1417 = scalar_lea.vmem %s5, 48
        %v1418 = vld [vmem:[%s1417] sm:$0xf]
        %v1419 = vld [vmem:[%s1417 + $0x4] sm:$0xf]
        %v1420 = vld [vmem:[%s1417 + $0x8] sm:$0xf]
        %v1421 = vld [vmem:[%s1417 + $0xc] sm:$0xf]
        %v1422 = vld [vmem:[%s1417 + $0x10] sm:$0xf]
        %v1423 = vld [vmem:[%s1417 + $0x14] sm:$0xf]
        %v1424 = vld [vmem:[%s1417 + $0x18] sm:$0xf]
        %v1425 = vld [vmem:[%s1417 + $0x1c] sm:$0xf]
        %v1426 = vld [vmem:[%s1417 + $0x20] sm:$0xf]
        %v1427 = vld [vmem:[%s1417 + $0x24] sm:$0xf]
        %v1428 = vld [vmem:[%s1417 + $0x28] sm:$0xf]
        %v1429 = vld [vmem:[%s1417 + $0x2c] sm:$0xf]
        %v1442 = vunpack.c.l.b16 %v1418
        %v1443 = vunpack.c.l.b16 %v1419
        %v1444 = vunpack.c.l.b16 %v1420
        %v1445 = vunpack.c.l.b16 %v1421
        %v1446 = vunpack.c.l.b16 %v1422
        %v1447 = vunpack.c.l.b16 %v1423
        %v1448 = vunpack.c.l.b16 %v1424
        %v1449 = vunpack.c.l.b16 %v1425
        %v1450 = vunpack.c.l.b16 %v1426
        %v1451 = vunpack.c.l.b16 %v1427
        %v1452 = vunpack.c.l.b16 %v1428
        %v1453 = vunpack.c.l.b16 %v1429
        %v1454 = vpack.c.b16 %v1443, %v1442
        %v1455 = vpack.c.b16 %v1445, %v1444
        %v1456 = vpack.c.b16 %v1447, %v1446
        %v1457 = vpack.c.b16 %v1449, %v1448
        %v1458 = vpack.c.b16 %v1451, %v1450
        %v1459 = vpack.c.b16 %v1453, %v1452
        %vm1466 = vcmask 785408
        %v1468 = vsel %vm1466, %v1397, 0
        %v1471 = vsel %vm1466, %v1398, 0
        %v1474 = vsel %vm1466, %v1399, 0
        %v1477 = vsel %vm1466, %v1400, 0
        %v1480 = vsel %vm1466, %v1401, 0
        %v1483 = vsel %vm1466, %v1402, 0
        %v1486 = vsel %vm1466, %v1403, 0
        %v1489 = vsel %vm1466, %v1416, 0
        %1491 = vmatprep.subr.bf16.mxu0 0
        %1492 = vmatpush1.bf16.msra.mxu0 %v1454
        %1493 = vmatprep.subr.bf16.mxu0 0
        %1494 = vmatpush1.bf16.msra.mxu0 %v1455
        %1495 = vmatprep.subr.bf16.mxu0 0
        %1496 = vmatpush1.bf16.msra.mxu0 %v1456
        %1497 = vmatprep.subr.bf16.mxu0 0
        %1498 = vmatpush1.bf16.msra.mxu0 %v1457
        %1499 = vmatprep.subr.bf16.mxu0 0
        %1500 = vmatpush1.bf16.msra.mxu0 %v1458
        %1501 = vmatprep.subr.bf16.mxu0 0
        %1502 = vmatpush1.bf16.msra.mxu0 %v1459
        %1503 = vmatprep.subr.bf16.mxu0 0
        %1504 = vmatpush1.bf16.msra.mxu0 0
        %1505 = vmatprep.subr.bf16.mxu0 0
        %1506 = vmatpush1.bf16.msra.mxu0 0
        %1507 = vmatprep.subr.bf16.mxu0 0
        %1508 = vmatpush1.bf16.msra.mxu0 0
        %1509 = vmatprep.subr.bf16.mxu0 0
        %1510 = vmatpush1.bf16.msra.mxu0 0
        %1511 = vmatprep.subr.bf16.mxu0 0
        %1512 = vmatpush1.bf16.msra.mxu0 0
        %1513 = vmatprep.subr.bf16.mxu0 0
        %1514 = vmatpush1.bf16.msra.mxu0 0
        %1515 = vmatprep.subr.bf16.mxu0 0
        %1516 = vmatpush1.bf16.msra.mxu0 0
        %1517 = vmatprep.subr.bf16.mxu0 0
        %1518 = vmatpush1.bf16.msra.mxu0 0
        %1519 = vmatprep.subr.bf16.mxu0 0
        %1520 = vmatpush1.bf16.msra.mxu0 0
        %1521 = vmatprep.subr.bf16.mxu0 0
        %1522 = vmatpush1.bf16.msra.mxu0 0
        %1523 = vmatprep.mubr.bf16.mxu0 0
        %1524 = vmatmul.mubr.bf16.gmra.mrb[0].mxu0 %v1468
        %v1525 = vpop.f32.mrb[0].mxu0
        %v1526 = vadd.f32 0.0, %v1525
        %v1527 = vpop.f32.mrb[0].mxu0
        %v1528 = vpop.f32.mrb[0].mxu0
        %v1529 = vadd.f32 0.0, %v1528
        %v1530 = vpop.f32.mrb[0].mxu0
        %1531 = vmatprep.mubr.bf16.mxu0 0
        %1532 = vmatmul.mubr.bf16.gmra.mrb[0].mxu0 %v1471
        %v1533 = vpop.f32.mrb[0].mxu0
        %v1534 = vadd.f32 0.0, %v1533
        %v1535 = vpop.f32.mrb[0].mxu0
        %v1536 = vpop.f32.mrb[0].mxu0
        %v1537 = vadd.f32 0.0, %v1536
        %v1538 = vpop.f32.mrb[0].mxu0
        %1539 = vmatprep.mubr.bf16.mxu0 0
        %1540 = vmatmul.mubr.bf16.gmra.mrb[0].mxu0 %v1474
        %v1541 = vpop.f32.mrb[0].mxu0
        %v1542 = vadd.f32 0.0, %v1541
        %v1543 = vpop.f32.mrb[0].mxu0
        %v1544 = vpop.f32.mrb[0].mxu0
        %v1545 = vadd.f32 0.0, %v1544
        %v1546 = vpop.f32.mrb[0].mxu0
        %1547 = vmatprep.mubr.bf16.mxu0 0
        %1548 = vmatmul.mubr.bf16.gmra.mrb[0].mxu0 %v1477
        %v1549 = vpop.f32.mrb[0].mxu0
        %v1550 = vadd.f32 0.0, %v1549
        %v1551 = vpop.f32.mrb[0].mxu0
        %v1552 = vpop.f32.mrb[0].mxu0
        %v1553 = vadd.f32 0.0, %v1552
        %v1554 = vpop.f32.mrb[0].mxu0
        %1555 = vmatprep.mubr.bf16.mxu0 0
        %1556 = vmatmul.mubr.bf16.gmra.mrb[0].mxu0 %v1480
        %v1557 = vpop.f32.mrb[0].mxu0
        %v1558 = vadd.f32 0.0, %v1557
        %v1559 = vpop.f32.mrb[0].mxu0
        %v1560 = vpop.f32.mrb[0].mxu0
        %v1561 = vadd.f32 0.0, %v1560
        %v1562 = vpop.f32.mrb[0].mxu0
        %1563 = vmatprep.mubr.bf16.mxu0 0
        %1564 = vmatmul.mubr.bf16.gmra.mrb[0].mxu0 %v1483
        %v1565 = vpop.f32.mrb[0].mxu0
        %v1566 = vadd.f32 0.0, %v1565
        %v1567 = vpop.f32.mrb[0].mxu0
        %v1568 = vpop.f32.mrb[0].mxu0
        %v1569 = vadd.f32 0.0, %v1568
        %v1570 = vpop.f32.mrb[0].mxu0
        %1571 = vmatprep.mubr.bf16.mxu0 0
        %1572 = vmatmul.mubr.bf16.gmra.mrb[0].mxu0 %v1486
        %v1573 = vpop.f32.mrb[0].mxu0
        %v1574 = vadd.f32 0.0, %v1573
        %v1575 = vpop.f32.mrb[0].mxu0
        %v1576 = vpop.f32.mrb[0].mxu0
        %v1577 = vadd.f32 0.0, %v1576
        %v1578 = vpop.f32.mrb[0].mxu0
        %1579 = vmatprep.mubr.bf16.mxu0 0
        %1580 = vmatmul.mubr.bf16.gmra.mrb[0].mxu0 %v1489
        %v1581 = vpop.f32.mrb[0].mxu0
        %v1582 = vadd.f32 0.0, %v1581
        %v1583 = vpop.f32.mrb[0].mxu0
        %v1584 = vpop.f32.mrb[0].mxu0
        %v1585 = vadd.f32 0.0, %v1584
        %v1586 = vpop.f32.mrb[0].mxu0
        %1587 = vdwg.mxu0
        %v1600 = vunpack.c.l.b16 %v1404
        %v1601 = vunpack.c.l.b16 %v1405
        %v1602 = vunpack.c.l.b16 %v1406
        %v1603 = vunpack.c.l.b16 %v1407
        %v1604 = vunpack.c.l.b16 %v1408
        %v1605 = vunpack.c.l.b16 %v1409
        %v1606 = vunpack.c.l.b16 %v1410
        %v1607 = vunpack.c.l.b16 %v1411
        %v1608 = vunpack.c.l.b16 %v1412
        %v1609 = vunpack.c.l.b16 %v1413
        %v1610 = vunpack.c.l.b16 %v1414
        %v1611 = vunpack.c.l.b16 %v1415
        %v1612 = vpack.c.b16 %v1601, %v1600
        %v1613 = vpack.c.b16 %v1603, %v1602
        %v1614 = vpack.c.b16 %v1605, %v1604
        %v1615 = vpack.c.b16 %v1607, %v1606
        %v1616 = vpack.c.b16 %v1609, %v1608
        %v1617 = vpack.c.b16 %v1611, %v1610
        %v1625 = vsel %vm1466, %v1396, 0
        %1627 = vmatprep.subr.bf16.mxu0 0
        %1628 = vmatpush1.bf16.msra.mxu0 %v1612
        %1629 = vmatprep.subr.bf16.mxu0 0
        %1630 = vmatpush1.bf16.msra.mxu0 %v1613
        %1631 = vmatprep.subr.bf16.mxu0 0
        %1632 = vmatpush1.bf16.msra.mxu0 %v1614
        %1633 = vmatprep.subr.bf16.mxu0 0
        %1634 = vmatpush1.bf16.msra.mxu0 %v1615
        %1635 = vmatprep.subr.bf16.mxu0 0
        %1636 = vmatpush1.bf16.msra.mxu0 %v1616
        %1637 = vmatprep.subr.bf16.mxu0 0
        %1638 = vmatpush1.bf16.msra.mxu0 %v1617
        %1639 = vmatprep.subr.bf16.mxu0 0
        %1640 = vmatpush1.bf16.msra.mxu0 0
        %1641 = vmatprep.subr.bf16.mxu0 0
        %1642 = vmatpush1.bf16.msra.mxu0 0
        %1643 = vmatprep.subr.bf16.mxu0 0
        %1644 = vmatpush1.bf16.msra.mxu0 0
        %1645 = vmatprep.subr.bf16.mxu0 0
        %1646 = vmatpush1.bf16.msra.mxu0 0
        %1647 = vmatprep.subr.bf16.mxu0 0
        %1648 = vmatpush1.bf16.msra.mxu0 0
        %1649 = vmatprep.subr.bf16.mxu0 0
        %1650 = vmatpush1.bf16.msra.mxu0 0
        %1651 = vmatprep.subr.bf16.mxu0 0
        %1652 = vmatpush1.bf16.msra.mxu0 0
        %1653 = vmatprep.subr.bf16.mxu0 0
        %1654 = vmatpush1.bf16.msra.mxu0 0
        %1655 = vmatprep.subr.bf16.mxu0 0
        %1656 = vmatpush1.bf16.msra.mxu0 0
        %1657 = vmatprep.subr.bf16.mxu0 0
        %1658 = vmatpush1.bf16.msra.mxu0 0
        %1659 = vmatprep.mubr.bf16.mxu0 0
        %1660 = vmatmul.mubr.bf16.gmra.mrb[0].mxu0 %v1625
        %v1661 = vpop.f32.mrb[0].mxu0
        %v1662 = vadd.f32 %v1526, %v1661
        %v1663 = vpop.f32.mrb[0].mxu0
        %v1664 = vpop.f32.mrb[0].mxu0
        %v1665 = vadd.f32 %v1529, %v1664
        %v1666 = vpop.f32.mrb[0].mxu0
        %1667 = vmatprep.mubr.bf16.mxu0 0
        %1668 = vmatmul.mubr.bf16.gmra.mrb[0].mxu0 %v1468
        %v1669 = vpop.f32.mrb[0].mxu0
        %v1670 = vadd.f32 %v1534, %v1669
        %v1671 = vpop.f32.mrb[0].mxu0
        %v1672 = vpop.f32.mrb[0].mxu0
        %v1673 = vadd.f32 %v1537, %v1672
        %v1674 = vpop.f32.mrb[0].mxu0
        %1675 = vmatprep.mubr.bf16.mxu0 0
        %1676 = vmatmul.mubr.bf16.gmra.mrb[0].mxu0 %v1471
        %v1677 = vpop.f32.mrb[0].mxu0
        %v1678 = vadd.f32 %v1542, %v1677
        %v1679 = vpop.f32.mrb[0].mxu0
        %v1680 = vpop.f32.mrb[0].mxu0
        %v1681 = vadd.f32 %v1545, %v1680
        %v1682 = vpop.f32.mrb[0].mxu0
        %1683 = vmatprep.mubr.bf16.mxu0 0
        %1684 = vmatmul.mubr.bf16.gmra.mrb[0].mxu0 %v1474
        %v1685 = vpop.f32.mrb[0].mxu0
        %v1686 = vadd.f32 %v1550, %v1685
        %v1687 = vpop.f32.mrb[0].mxu0
        %v1688 = vpop.f32.mrb[0].mxu0
        %v1689 = vadd.f32 %v1553, %v1688
        %v1690 = vpop.f32.mrb[0].mxu0
        %1691 = vmatprep.mubr.bf16.mxu0 0
        %1692 = vmatmul.mubr.bf16.gmra.mrb[0].mxu0 %v1477
        %v1693 = vpop.f32.mrb[0].mxu0
        %v1694 = vadd.f32 %v1558, %v1693
        %v1695 = vpop.f32.mrb[0].mxu0
        %v1696 = vpop.f32.mrb[0].mxu0
        %v1697 = vadd.f32 %v1561, %v1696
        %v1698 = vpop.f32.mrb[0].mxu0
        %1699 = vmatprep.mubr.bf16.mxu0 0
        %1700 = vmatmul.mubr.bf16.gmra.mrb[0].mxu0 %v1480
        %v1701 = vpop.f32.mrb[0].mxu0
        %v1702 = vadd.f32 %v1566, %v1701
        %v1703 = vpop.f32.mrb[0].mxu0
        %v1704 = vpop.f32.mrb[0].mxu0
        %v1705 = vadd.f32 %v1569, %v1704
        %v1706 = vpop.f32.mrb[0].mxu0
        %1707 = vmatprep.mubr.bf16.mxu0 0
        %1708 = vmatmul.mubr.bf16.gmra.mrb[0].mxu0 %v1483
        %v1709 = vpop.f32.mrb[0].mxu0
        %v1710 = vadd.f32 %v1574, %v1709
        %v1711 = vpop.f32.mrb[0].mxu0
        %v1712 = vpop.f32.mrb[0].mxu0
        %v1713 = vadd.f32 %v1577, %v1712
        %v1714 = vpop.f32.mrb[0].mxu0
        %1715 = vmatprep.mubr.bf16.mxu0 0
        %1716 = vmatmul.mubr.bf16.gmra.mrb[0].mxu0 %v1486
        %v1717 = vpop.f32.mrb[0].mxu0
        %v1718 = vadd.f32 %v1582, %v1717
        %v1719 = vpop.f32.mrb[0].mxu0
        %v1720 = vpop.f32.mrb[0].mxu0
        %v1721 = vadd.f32 %v1585, %v1720
        %v1722 = vpop.f32.mrb[0].mxu0
        %1723 = vdwg.mxu0
        %v1724 = vld [vmem:[#allocation2 + $0x18] sm:$0xff]
        %v1725 = vld [vmem:[#allocation2 + $0x20] sm:$0xff]
        %v1726 = vld [vmem:[#allocation2 + $0x28] sm:$0xff]
        %v1727 = vld [vmem:[#allocation2 + $0x30] sm:$0xff]
        %v1728 = vld [vmem:[#allocation2 + $0x38] sm:$0xff]
        %v1729 = vld [vmem:[#allocation2 + $0x40] sm:$0xff]
        %v1730 = vld [vmem:[#allocation2 + $0x48] sm:$0xff]
        %v1731 = vld [vmem:[#allocation2 + $0x50] sm:$0xff]
        %s1732 = scalar_lea.vmem %s5, 96
        %v1733 = vld [vmem:[%s1732] sm:$0xf]
        %v1734 = vld [vmem:[%s1732 + $0x4] sm:$0xf]
        %v1735 = vld [vmem:[%s1732 + $0x8] sm:$0xf]
        %v1736 = vld [vmem:[%s1732 + $0xc] sm:$0xf]
        %v1737 = vld [vmem:[%s1732 + $0x10] sm:$0xf]
        %v1738 = vld [vmem:[%s1732 + $0x14] sm:$0xf]
        %v1739 = vld [vmem:[%s1732 + $0x18] sm:$0xf]
        %v1740 = vld [vmem:[%s1732 + $0x1c] sm:$0xf]
        %v1741 = vld [vmem:[%s1732 + $0x20] sm:$0xf]
        %v1742 = vld [vmem:[%s1732 + $0x24] sm:$0xf]
        %v1743 = vld [vmem:[%s1732 + $0x28] sm:$0xf]
        %v1744 = vld [vmem:[%s1732 + $0x2c] sm:$0xf]
        %v1757 = vunpack.c.l.b16 %v1733
        %v1758 = vunpack.c.l.b16 %v1734
        %v1759 = vunpack.c.l.b16 %v1735
        %v1760 = vunpack.c.l.b16 %v1736
        %v1761 = vunpack.c.l.b16 %v1737
        %v1762 = vunpack.c.l.b16 %v1738
        %v1763 = vunpack.c.l.b16 %v1739
        %v1764 = vunpack.c.l.b16 %v1740
        %v1765 = vunpack.c.l.b16 %v1741
        %v1766 = vunpack.c.l.b16 %v1742
        %v1767 = vunpack.c.l.b16 %v1743
        %v1768 = vunpack.c.l.b16 %v1744
        %v1769 = vpack.c.b16 %v1758, %v1757
        %v1770 = vpack.c.b16 %v1760, %v1759
        %v1771 = vpack.c.b16 %v1762, %v1761
        %v1772 = vpack.c.b16 %v1764, %v1763
        %v1773 = vpack.c.b16 %v1766, %v1765
        %v1774 = vpack.c.b16 %v1768, %v1767
        %v1782 = vsel %vm1466, %v1724, 0
        %v1785 = vsel %vm1466, %v1725, 0
        %v1788 = vsel %vm1466, %v1726, 0
        %v1791 = vsel %vm1466, %v1727, 0
        %v1794 = vsel %vm1466, %v1728, 0
        %v1797 = vsel %vm1466, %v1729, 0
        %v1800 = vsel %vm1466, %v1730, 0
        %v1803 = vsel %vm1466, %v1731, 0
        %1805 = vmatprep.subr.bf16.mxu0 0
        %1806 = vmatpush1.bf16.msra.mxu0 %v1769
        %1807 = vmatprep.subr.bf16.mxu0 0
        %1808 = vmatpush1.bf16.msra.mxu0 %v1770
        %1809 = vmatprep.subr.bf16.mxu0 0
        %1810 = vmatpush1.bf16.msra.mxu0 %v1771
        %1811 = vmatprep.subr.bf16.mxu0 0
        %1812 = vmatpush1.bf16.msra.mxu0 %v1772
        %1813 = vmatprep.subr.bf16.mxu0 0
        %1814 = vmatpush1.bf16.msra.mxu0 %v1773
        %1815 = vmatprep.subr.bf16.mxu0 0
        %1816 = vmatpush1.bf16.msra.mxu0 %v1774
        %1817 = vmatprep.subr.bf16.mxu0 0
        %1818 = vmatpush1.bf16.msra.mxu0 0
        %1819 = vmatprep.subr.bf16.mxu0 0
        %1820 = vmatpush1.bf16.msra.mxu0 0
        %1821 = vmatprep.subr.bf16.mxu0 0
        %1822 = vmatpush1.bf16.msra.mxu0 0
        %1823 = vmatprep.subr.bf16.mxu0 0
        %1824 = vmatpush1.bf16.msra.mxu0 0
        %1825 = vmatprep.subr.bf16.mxu0 0
        %1826 = vmatpush1.bf16.msra.mxu0 0
        %1827 = vmatprep.subr.bf16.mxu0 0
        %1828 = vmatpush1.bf16.msra.mxu0 0
        %1829 = vmatprep.subr.bf16.mxu0 0
        %1830 = vmatpush1.bf16.msra.mxu0 0
        %1831 = vmatprep.subr.bf16.mxu0 0
        %1832 = vmatpush1.bf16.msra.mxu0 0
        %1833 = vmatprep.subr.bf16.mxu0 0
        %1834 = vmatpush1.bf16.msra.mxu0 0
        %1835 = vmatprep.subr.bf16.mxu0 0
        %1836 = vmatpush1.bf16.msra.mxu0 0
        %1837 = vmatprep.mubr.bf16.mxu0 0
        %1838 = vmatmul.mubr.bf16.gmra.mrb[0].mxu0 %v1782
        %v1839 = vpop.f32.mrb[0].mxu0
        %v1840 = vadd.f32 0.0, %v1839
        %v1841 = vpop.f32.mrb[0].mxu0
        %v1842 = vpop.f32.mrb[0].mxu0
        %v1843 = vadd.f32 0.0, %v1842
        %v1844 = vpop.f32.mrb[0].mxu0
        %1845 = vmatprep.mubr.bf16.mxu0 0
        %1846 = vmatmul.mubr.bf16.gmra.mrb[0].mxu0 %v1785
        %v1847 = vpop.f32.mrb[0].mxu0
        %v1848 = vadd.f32 0.0, %v1847
        %v1849 = vpop.f32.mrb[0].mxu0
        %v1850 = vpop.f32.mrb[0].mxu0
        %v1851 = vadd.f32 0.0, %v1850
        %v1852 = vpop.f32.mrb[0].mxu0
        %1853 = vmatprep.mubr.bf16.mxu0 0
        %1854 = vmatmul.mubr.bf16.gmra.mrb[0].mxu0 %v1788
        %v1855 = vpop.f32.mrb[0].mxu0
        %v1856 = vadd.f32 0.0, %v1855
        %v1857 = vpop.f32.mrb[0].mxu0
        %v1858 = vpop.f32.mrb[0].mxu0
        %v1859 = vadd.f32 0.0, %v1858
        %v1860 = vpop.f32.mrb[0].mxu0
        %1861 = vmatprep.mubr.bf16.mxu0 0
        %1862 = vmatmul.mubr.bf16.gmra.mrb[0].mxu0 %v1791
        %v1863 = vpop.f32.mrb[0].mxu0
        %v1864 = vadd.f32 0.0, %v1863
        %v1865 = vpop.f32.mrb[0].mxu0
        %v1866 = vpop.f32.mrb[0].mxu0
        %v1867 = vadd.f32 0.0, %v1866
        %v1868 = vpop.f32.mrb[0].mxu0
        %1869 = vmatprep.mubr.bf16.mxu0 0
        %1870 = vmatmul.mubr.bf16.gmra.mrb[0].mxu0 %v1794
        %v1871 = vpop.f32.mrb[0].mxu0
        %v1872 = vadd.f32 0.0, %v1871
        %v1873 = vpop.f32.mrb[0].mxu0
        %v1874 = vpop.f32.mrb[0].mxu0
        %v1875 = vadd.f32 0.0, %v1874
        %v1876 = vpop.f32.mrb[0].mxu0
        %1877 = vmatprep.mubr.bf16.mxu0 0
        %1878 = vmatmul.mubr.bf16.gmra.mrb[0].mxu0 %v1797
        %v1879 = vpop.f32.mrb[0].mxu0
        %v1880 = vadd.f32 0.0, %v1879
        %v1881 = vpop.f32.mrb[0].mxu0
        %v1882 = vpop.f32.mrb[0].mxu0
        %v1883 = vadd.f32 0.0, %v1882
        %v1884 = vpop.f32.mrb[0].mxu0
        %1885 = vmatprep.mubr.bf16.mxu0 0
        %1886 = vmatmul.mubr.bf16.gmra.mrb[0].mxu0 %v1800
        %v1887 = vpop.f32.mrb[0].mxu0
        %v1888 = vadd.f32 0.0, %v1887
        %v1889 = vpop.f32.mrb[0].mxu0
        %v1890 = vpop.f32.mrb[0].mxu0
        %v1891 = vadd.f32 0.0, %v1890
        %v1892 = vpop.f32.mrb[0].mxu0
        %1893 = vmatprep.mubr.bf16.mxu0 0
        %1894 = vmatmul.mubr.bf16.gmra.mrb[0].mxu0 %v1803
        %v1895 = vpop.f32.mrb[0].mxu0
        %v1896 = vadd.f32 0.0, %v1895
        %v1897 = vpop.f32.mrb[0].mxu0
        %v1898 = vpop.f32.mrb[0].mxu0
        %v1899 = vadd.f32 0.0, %v1898
        %v1900 = vpop.f32.mrb[0].mxu0
        %1901 = vdwg.mxu0
        %v1902 = vadd.f32 %v1662, %v1840
        %v1903 = vadd.f32 %v1665, %v1843
        %v1904 = vadd.f32 %v1670, %v1848
        %v1905 = vadd.f32 %v1673, %v1851
        %v1906 = vadd.f32 %v1678, %v1856
        %v1907 = vadd.f32 %v1681, %v1859
        %v1908 = vadd.f32 %v1686, %v1864
        %v1909 = vadd.f32 %v1689, %v1867
        %v1910 = vadd.f32 %v1694, %v1872
        %v1911 = vadd.f32 %v1697, %v1875
        %v1912 = vadd.f32 %v1702, %v1880
        %v1913 = vadd.f32 %v1705, %v1883
        %v1914 = vadd.f32 %v1710, %v1888
        %v1915 = vadd.f32 %v1713, %v1891
        %v1916 = vadd.f32 %v1718, %v1896
        %v1917 = vadd.f32 %v1721, %v1899
        %v1918 = vld [vmem:[%s6] sm:$0x1]
        %v1920 = vlaneseq
        %v1921 = vshrl.u32 %v1920, 7
        %v1922 = vsub.s32 0, %v1921
        %v1923 = vrot.slane %v1918, %v1922
        %v1925 = vadd.f32 %v1902, %v1923
        %v1926 = vadd.f32 %v1903, %v1923
        %v1927 = vadd.f32 %v1904, %v1923
        %v1928 = vadd.f32 %v1905, %v1923
        %v1929 = vadd.f32 %v1906, %v1923
        %v1930 = vadd.f32 %v1907, %v1923
        %v1931 = vadd.f32 %v1908, %v1923
        %v1932 = vadd.f32 %v1909, %v1923
        %v1933 = vadd.f32 %v1910, %v1923
        %v1934 = vadd.f32 %v1911, %v1923
        %v1935 = vadd.f32 %v1912, %v1923
        %v1936 = vadd.f32 %v1913, %v1923
        %v1937 = vadd.f32 %v1914, %v1923
        %v1938 = vadd.f32 %v1915, %v1923
        %v1939 = vadd.f32 %v1916, %v1923
        %v1940 = vadd.f32 %v1917, %v1923
        %v1941 = vpack.c.bf16 %v1926, %v1925
        %v1942 = vpack.c.bf16 %v1928, %v1927
        %v1943 = vpack.c.bf16 %v1930, %v1929
        %v1944 = vpack.c.bf16 %v1932, %v1931
        %v1945 = vpack.c.bf16 %v1934, %v1933
        %v1946 = vpack.c.bf16 %v1936, %v1935
        %v1947 = vpack.c.bf16 %v1938, %v1937
        %v1948 = vpack.c.bf16 %v1940, %v1939
        %v1957 = vunpack.c.l.b16 %v1941
        %v1958 = vunpack.c.h.b16 %v1941
        %v1959 = vunpack.c.l.b16 %v1942
        %v1960 = vunpack.c.h.b16 %v1942
        %v1961 = vunpack.c.l.b16 %v1943
        %v1962 = vunpack.c.h.b16 %v1943
        %v1963 = vunpack.c.l.b16 %v1944
        %v1964 = vunpack.c.h.b16 %v1944
        %v1965 = vunpack.c.l.b16 %v1945
        %v1966 = vunpack.c.h.b16 %v1945
        %v1967 = vunpack.c.l.b16 %v1946
        %v1968 = vunpack.c.h.b16 %v1946
        %v1969 = vunpack.c.l.b16 %v1947
        %v1970 = vunpack.c.h.b16 %v1947
        %v1971 = vunpack.c.l.b16 %v1948
        %v1972 = vunpack.c.h.b16 %v1948
        %v1973 = vpack.c.b16 %v1957, %v1957
        %v1974 = vpack.c.b16 %v1958, %v1958
        %v1975 = vpack.c.b16 %v1959, %v1959
        %v1976 = vpack.c.b16 %v1960, %v1960
        %v1977 = vpack.c.b16 %v1961, %v1961
        %v1978 = vpack.c.b16 %v1962, %v1962
        %v1979 = vpack.c.b16 %v1963, %v1963
        %v1980 = vpack.c.b16 %v1964, %v1964
        %v1981 = vpack.c.b16 %v1965, %v1965
        %v1982 = vpack.c.b16 %v1966, %v1966
        %v1983 = vpack.c.b16 %v1967, %v1967
        %v1984 = vpack.c.b16 %v1968, %v1968
        %v1985 = vpack.c.b16 %v1969, %v1969
        %v1986 = vpack.c.b16 %v1970, %v1970
        %v1987 = vpack.c.b16 %v1971, %v1971
        %v1988 = vpack.c.b16 %v1972, %v1972
        %vm2005 = vcmask 519168
        %2006 = vst.msk [vmem:[%s446] sm:$0xf] %vm2005, %v1973
        %2007 = vst.msk [vmem:[%s446 + $0x4] sm:$0xf] %vm2005, %v1974
        %2008 = vst.msk [vmem:[%s446 + $0x8] sm:$0xf] %vm2005, %v1975
        %2009 = vst.msk [vmem:[%s446 + $0xc] sm:$0xf] %vm2005, %v1976
        %2010 = vst.msk [vmem:[%s446 + $0x10] sm:$0xf] %vm2005, %v1977
        %2011 = vst.msk [vmem:[%s446 + $0x14] sm:$0xf] %vm2005, %v1978
        %2012 = vst.msk [vmem:[%s446 + $0x18] sm:$0xf] %vm2005, %v1979
        %2013 = vst.msk [vmem:[%s446 + $0x1c] sm:$0xf] %vm2005, %v1980
        %2014 = vst.msk [vmem:[%s446 + $0x20] sm:$0xf] %vm2005, %v1981
        %2015 = vst.msk [vmem:[%s446 + $0x24] sm:$0xf] %vm2005, %v1982
        %2016 = vst.msk [vmem:[%s446 + $0x28] sm:$0xf] %vm2005, %v1983
        %2017 = vst.msk [vmem:[%s446 + $0x2c] sm:$0xf] %vm2005, %v1984
        %2018 = vst.msk [vmem:[%s446 + $0x30] sm:$0xf] %vm2005, %v1985
        %2019 = vst.msk [vmem:[%s446 + $0x34] sm:$0xf] %vm2005, %v1986
        %2020 = vst.msk [vmem:[%s446 + $0x38] sm:$0xf] %vm2005, %v1987
        %2021 = vst.msk [vmem:[%s446 + $0x3c] sm:$0xf] %vm2005, %v1988
        %s2022 = sand.u32 %s243, 1
        %s2023 = scalar_lea.sflag [#allocation5], %s2022
        %s2024 = sand.u32 %s243, 1
        %s2025 = smul.addr %s2024, 64
        %s2026 = scalar_lea.vmem [#allocation9], %s2025
        // Predicated region
        $region61: #{tpu_custom_call.1} parent=47 // pred_check
          %p2027 = pneg %p253
        $region62: #{tpu_custom_call.1} parent=47 // pred_check_branch
          %2029 = sbr.rel (%p2027) target = $region64
        $region63: #{tpu_custom_call.1} parent=47 // pred_region
          %s2030 = smul.u32 8, %s32
          %s2032 = ssub.s32 1024, 1024
          %2033 = vsyncadd %s2023, %s2032
          %s2034 = smul.addr %s2030, 2
          %s2035 = smul.addr %s31, 32
          %s2036 = sadd.s32 %s2034, %s2035
          %s2037 = smul.addr %s2036, 64
          %s2038 = scalar_lea.hbm %s7, %s2037
          %s2039 = sshll.u32 %s2026, 4
          %s2040 = int_to_ptr.vmem [resolvable:$true] %s2039
          %2045 = dma.vmem_to_hbm [thread:$0]  %s2040, 1024, %s2038, %s2023, 64, 64, 4
        $region64: #{tpu_custom_call.1} parent=47 // pred_fallthru
          _
      $region48: #{tpu_custom_call.1} parent=5 // pred_fallthru
        _
      %p2046 = scmp.le.s32.totalorder 2, %s22
      // Predicated region
      $region65: #{tpu_custom_call.1} parent=5 // pred_check
        %p2047 = pneg %p2046
      $region66: #{tpu_custom_call.1} parent=5 // pred_check_branch
        %2049 = sbr.rel (%p2047) target = $region68
      $region67: #{tpu_custom_call.1} parent=5 // pred_region
        %s2050 = ssub.s32 %s22, 2
        // Predicated region
        $region69: #{tpu_custom_call.1} parent=67 // pred_check
          %p2051 = pneg %p259
        $region70: #{tpu_custom_call.1} parent=67 // pred_check_branch
          %2053 = sbr.rel (%p2051) target = $region72
        $region71: #{tpu_custom_call.1} parent=67 // pred_region
          %s2054 = sand.u32 %s244, 1
          %s2055 = scalar_lea.sflag [#allocation5], %s2054
          %s2056 = sand.u32 %s244, 1
          %s2057 = smul.addr %s2056, 64
          %s2058 = scalar_lea.vmem [#allocation9], %s2057
          %2059 = dma.done %s2055, 1024
        $region72: #{tpu_custom_call.1} parent=67 // pred_fallthru
          _
      $region68: #{tpu_custom_call.1} parent=5 // pred_fallthru
        _
    $region6: #{tpu_custom_call.1} parent=1 // loop_footer
      %s26 = sadd.s32 1, %s22
    $region7: #{tpu_custom_call.1} parent=1 // loop_footer_branch
      %21 = sbr.rel target = $region3
    $region8: #{tpu_custom_call.1} parent=1 // loop_exit
      _
    %2060 = vsyncpa [#allocation4], 1
    %s2061 = scalar_lea.sflag [#allocation4], 1
    %2062 = vsyncpa %s2061, 1
    %2063 = vsyncpa [#allocation7], 1
    %s2064 = scalar_lea.sflag [#allocation7], 1
    %2065 = vsyncpa %s2064, 1
    %2066 = vsyncpa [#allocation5], 1
    %s2067 = scalar_lea.sflag [#allocation5], 1
    %2068 = vsyncpa %s2067, 1

</llo_original>
